<compile_context>
chip_gen: v6e
topology: v6e:2x2x1
jax: 0.10.0
libtpu: 0.0.40
codegen_flags: <defaults>
</compile_context>

<pallas_src>
import functools

import jax
import jax.numpy as jnp
from jax import lax
from jax.experimental import pallas as pl
from jax.experimental.pallas import tpu as pltpu


# ---------------------------------------------------------------------------
# Fused kernel: qkv projection -> multi-head attention -> output projection
# ---------------------------------------------------------------------------

def _fused_attention_proj_kernel(x_ref, w_qkv_ref, w_out_ref, b_ref, o_ref, *,
                                 heads, dim_head, scale):
    """One batch element per grid step; every intermediate stays in VMEM.

    x_ref:     (1, N, dim)        pipelined per-batch tile
    w_qkv_ref: (dim, 3*inner)     VMEM-resident (constant index_map)
    w_out_ref: (inner, dim)       VMEM-resident
    b_ref:     (1, dim)           VMEM-resident
    o_ref:     (1, N, dim)
    """
    inner = heads * dim_head
    x = x_ref[0]                                              # (N, dim)

    # qkv projection: one large MXU matmul, fp32 accumulation.
    qkv = jnp.dot(x, w_qkv_ref[...], preferred_element_type=jnp.float32)

    # fp32 accumulator for the output projection; starts as the bias row
    # (broadcasts to (N, dim) on the first add).
    acc = b_ref[...].astype(jnp.float32)                      # (1, dim)

    for h in range(heads):
        lo = h * dim_head
        q = qkv[:, lo:lo + dim_head] * scale                  # (N, dh)
        k = qkv[:, inner + lo:inner + lo + dim_head]           # (N, dh)
        v = qkv[:, 2 * inner + lo:2 * inner + lo + dim_head]   # (N, dh)

        # q @ k^T via contraction on the trailing axis (no materialized .T).
        dots = lax.dot_general(q, k, (((1,), (1,)), ((), ())),
                               preferred_element_type=jnp.float32)   # (N, N)
        m = jnp.max(dots, axis=-1, keepdims=True)
        p = jnp.exp(dots - m)                                  # EUP
        attn = p / jnp.sum(p, axis=-1, keepdims=True)

        out_h = jnp.dot(attn, v, preferred_element_type=jnp.float32)  # (N, dh)
        # Fold the 'b n (h d)' merge + output projection into a per-head
        # partial matmul against the matching row-slice of W_out.
        w_out_h = w_out_ref[lo:lo + dim_head, :]               # (dh, dim)
        acc = acc + jnp.dot(out_h, w_out_h,
                            preferred_element_type=jnp.float32)

    o_ref[0] = acc.astype(o_ref.dtype)


def _fused_attention_noproj_kernel(x_ref, w_qkv_ref, o_ref, *, dim_head, scale):
    """project_out=False path (only reachable when heads == 1, dim_head == dim)."""
    x = x_ref[0]                                               # (N, dim)
    qkv = jnp.dot(x, w_qkv_ref[...], preferred_element_type=jnp.float32)
    q = qkv[:, :dim_head] * scale
    k = qkv[:, dim_head:2 * dim_head]
    v = qkv[:, 2 * dim_head:3 * dim_head]
    dots = lax.dot_general(q, k, (((1,), (1,)), ((), ())),
                           preferred_element_type=jnp.float32)
    m = jnp.max(dots, axis=-1, keepdims=True)
    p = jnp.exp(dots - m)
    attn = p / jnp.sum(p, axis=-1, keepdims=True)
    out = jnp.dot(attn, v, preferred_element_type=jnp.float32)
    o_ref[0] = out.astype(o_ref.dtype)


# ---------------------------------------------------------------------------
# Module wrapper (parameters + forward), matching Attention_source semantics
# ---------------------------------------------------------------------------

def init_attention_params(key, dim, heads=8, dim_head=64, dtype=jnp.float32):
    """nn.Linear-style init; weights stored pre-transposed as (d_in, d_out)."""
    inner_dim = heads * dim_head
    project_out = not (heads == 1 and dim_head == dim)
    k1, k2, k3 = jax.random.split(key, 3)
    bound_qkv = 1.0 / (dim ** 0.5)
    params = {
        "w_qkv_t": jax.random.uniform(k1, (dim, inner_dim * 3), dtype,
                                      -bound_qkv, bound_qkv),
    }
    if project_out:
        bound_out = 1.0 / (inner_dim ** 0.5)
        params["w_out_t"] = jax.random.uniform(k2, (inner_dim, dim), dtype,
                                               -bound_out, bound_out)
        params["b_out"] = jax.random.uniform(k3, (dim,), dtype,
                                             -bound_out, bound_out)
    return params


def attention_forward(params, x, *, heads, dim_head):
    """Attention_source.forward. x: (B, N, dim).  Dropout(p=0) is identity."""
    # TODO(synk): training-mode dropout (p>0) not implemented in-kernel.
    B, N, D = x.shape
    inner_dim = heads * dim_head
    scale = dim_head ** (-0.5)
    project_out = "w_out_t" in params
    itemsize = x.dtype.itemsize

    x_spec = pl.BlockSpec((1, N, D), lambda b: (b, 0, 0))
    wqkv_spec = pl.BlockSpec((D, 3 * inner_dim), lambda b: (0, 0))

    if project_out:
        kernel = functools.partial(_fused_attention_proj_kernel,
                                   heads=heads, dim_head=dim_head, scale=scale)
        in_specs = [
            x_spec,
            wqkv_spec,
            pl.BlockSpec((inner_dim, D), lambda b: (0, 0)),
            pl.BlockSpec((1, D), lambda b: (0, 0)),
        ]
        args = (x, params["w_qkv_t"], params["w_out_t"],
                params["b_out"].reshape(1, D))
        d_out = D
        flops = (2 * B * N * D * 3 * inner_dim            # qkv projection
                 + 4 * B * heads * N * N * dim_head       # QK^T and attn@V
                 + 2 * B * N * inner_dim * D)             # output projection
        bytes_accessed = (B * N * D + D * 3 * inner_dim + inner_dim * D + D
                          + B * N * d_out) * itemsize
    else:
        kernel = functools.partial(_fused_attention_noproj_kernel,
                                   dim_head=dim_head, scale=scale)
        in_specs = [x_spec, wqkv_spec]
        args = (x, params["w_qkv_t"])
        d_out = inner_dim
        flops = (2 * B * N * D * 3 * inner_dim
                 + 4 * B * heads * N * N * dim_head)
        bytes_accessed = (B * N * D + D * 3 * inner_dim
                          + B * N * d_out) * itemsize

    out_spec = pl.BlockSpec((1, N, d_out), lambda b: (b, 0, 0))

    y = pl.pallas_call(
        kernel,
        out_shape=jax.ShapeDtypeStruct((B, N, d_out), x.dtype),
        grid_spec=pltpu.PrefetchScalarGridSpec(
            num_scalar_prefetch=0,
            grid=(B,),
            in_specs=in_specs,
            out_specs=out_spec,
        ),
        compiler_params=pltpu.CompilerParams(
            dimension_semantics=("parallel",),        # batches are independent
            vmem_limit_bytes=32 * 1024 * 1024,
        ),
        cost_estimate=pl.CostEstimate(
            flops=flops,
            transcendentals=B * heads * N * N,
            bytes_accessed=bytes_accessed,
        ),
    )(*args)
    return y


def attention_reference(params, x, *, heads, dim_head):
    """Plain-JAX reference of the PyTorch module."""
    B, N, D = x.shape
    inner_dim = heads * dim_head
    scale = dim_head ** (-0.5)
    qkv = x @ params["w_qkv_t"]
    q, k, v = jnp.split(qkv, 3, axis=-1)

    def to_heads(t):
        return jnp.transpose(t.reshape(B, N, heads, dim_head), (0, 2, 1, 3))

    q, k, v = map(to_heads, (q, k, v))
    dots = jnp.einsum("bhid,bhjd->bhij", q, k) * scale
    attn = jax.nn.softmax(dots, axis=-1)
    out = jnp.einsum("bhij,bhjd->bhid", attn, v)
    out = jnp.transpose(out, (0, 2, 1, 3)).reshape(B, N, inner_dim)
    if "w_out_t" in params:
        out = out @ params["w_out_t"] + params["b_out"]
    return out


if __name__ == "__main__":
    key = jax.random.PRNGKey(0)
    k_x, k_p, k_x2, k_p2 = jax.random.split(key, 4)

    # ---- main path: project_out=True (dim=128, heads=4, dim_head=32) ----
    batch, seq, dim, heads, dim_head = 2, 16, 128, 4, 32
    x = jax.random.normal(k_x, (batch, seq, dim), jnp.float32)
    params = init_attention_params(k_p, dim, heads=heads, dim_head=dim_head)

    fwd = jax.jit(functools.partial(attention_forward, heads=heads,
                                    dim_head=dim_head))
    y = fwd(params, x)
    jax.block_until_ready(y)

    y_ref = attention_reference(params, x, heads=heads, dim_head=dim_head)
    assert y.shape == (batch, seq, dim)
    assert jnp.allclose(y, y_ref, atol=1e-2, rtol=1e-2), float(
        jnp.max(jnp.abs(y - y_ref)))

    # ---- identity to_out path: heads=1, dim_head=dim (project_out=False) ----
    heads2, dim_head2 = 1, 128
    x2 = jax.random.normal(k_x2, (batch, seq, dim), jnp.float32)
    params2 = init_attention_params(k_p2, dim, heads=heads2, dim_head=dim_head2)
    fwd2 = jax.jit(functools.partial(attention_forward, heads=heads2,
                                     dim_head=dim_head2))
    y2 = fwd2(params2, x2)
    jax.block_until_ready(y2)
    y2_ref = attention_reference(params2, x2, heads=heads2, dim_head=dim_head2)
    assert y2.shape == (batch, seq, dim)
    assert jnp.allclose(y2, y2_ref, atol=1e-2, rtol=1e-2), float(
        jnp.max(jnp.abs(y2 - y2_ref)))

    print("KERNEL_OK")
</pallas_src>

<mosaic_0001>
module attributes {stable_mosaic.version = 11 : i64} {
  func.func @_fused_attention_proj_kernel(%arg0: i32, %arg1: memref<1x16x128xf32, #tpu.memory_space<vmem>>, %arg2: memref<128x384xf32, #tpu.memory_space<vmem>>, %arg3: memref<128x128xf32, #tpu.memory_space<vmem>>, %arg4: memref<1x128xf32, #tpu.memory_space<vmem>>, %arg5: memref<1x16x128xf32, #tpu.memory_space<vmem>>) attributes {dimension_semantics = [#tpu.dimension_semantics<parallel>], iteration_bounds = array<i64: 2>, scalar_prefetch = 0 : i64, scratch_operands = 0 : i64, tpu.core_type = #tpu.core_type<tc>, window_params = [{transform_indices = @transform_0, window_bounds = array<i64: 1, 16, 128>}, {pipeline_mode = #tpu.pipeline_mode<synchronous>, transform_indices = @transform_1, window_bounds = array<i64: 128, 384>}, {pipeline_mode = #tpu.pipeline_mode<synchronous>, transform_indices = @transform_2, window_bounds = array<i64: 128, 128>}, {pipeline_mode = #tpu.pipeline_mode<synchronous>, transform_indices = @transform_3, window_bounds = array<i64: 1, 128>}, {transform_indices = @transform_4, window_bounds = array<i64: 1, 16, 128>}]} {
    %c0 = arith.constant 0 : index
    %c0_0 = arith.constant 0 : index
    %c0_1 = arith.constant 0 : index
    %0 = vector.load %arg1[%c0, %c0_0, %c0_1] : memref<1x16x128xf32, #tpu.memory_space<vmem>>, vector<1x16x128xf32>
    %1 = vector.shape_cast %0 : vector<1x16x128xf32> to vector<16x128xf32>
    %c0_2 = arith.constant 0 : index
    %c0_3 = arith.constant 0 : index
    %2 = vector.load %arg2[%c0_2, %c0_3] : memref<128x384xf32, #tpu.memory_space<vmem>>, vector<128x384xf32>
    %cst = arith.constant dense<0.000000e+00> : vector<16x384xf32>
    %3 = tpu.matmul %1, %2, %cst {dimension_numbers = #tpu.dot_dimension_numbers<[1], [0], [0], [1], [0, 0, 1, 1], [], []>} : vector<16x128xf32>, vector<128x384xf32>, vector<16x384xf32> -> vector<16x384xf32>
    %c0_4 = arith.constant 0 : index
    %c0_5 = arith.constant 0 : index
    %4 = vector.load %arg4[%c0_4, %c0_5] : memref<1x128xf32, #tpu.memory_space<vmem>>, vector<1x128xf32>
    %5 = vector.extract_strided_slice %3 {offsets = [0, 0], sizes = [16, 32], strides = [1, 1]} : vector<16x384xf32> to vector<16x32xf32>
    %cst_6 = arith.constant 0.176776692 : f32
    %6 = vector.broadcast %cst_6 : f32 to vector<16x32xf32>
    %7 = arith.mulf %5, %6 : vector<16x32xf32>
    %8 = vector.extract_strided_slice %3 {offsets = [0, 128], sizes = [16, 32], strides = [1, 1]} : vector<16x384xf32> to vector<16x32xf32>
    %9 = vector.extract_strided_slice %3 {offsets = [0, 256], sizes = [16, 32], strides = [1, 1]} : vector<16x384xf32> to vector<16x32xf32>
    %cst_7 = arith.constant dense<0.000000e+00> : vector<16x16xf32>
    %10 = tpu.matmul %7, %8, %cst_7 {dimension_numbers = #tpu.dot_dimension_numbers<[1], [1], [0], [0], [0, 0, 1, 0], [], []>} : vector<16x32xf32>, vector<16x32xf32>, vector<16x16xf32> -> vector<16x16xf32>
    %cst_8 = arith.constant dense<0xFF800000> : vector<16xf32>
    %11 = vector.multi_reduction <maximumf>, %10, %cst_8 [1] : vector<16x16xf32> to vector<16xf32>
    %12 = vector.shape_cast %11 : vector<16xf32> to vector<16x1xf32>
    %13 = vector.broadcast %12 : vector<16x1xf32> to vector<16x16xf32>
    %14 = arith.subf %10, %13 : vector<16x16xf32>
    %15 = math.exp %14 : vector<16x16xf32>
    %cst_9 = arith.constant dense<0.000000e+00> : vector<16xf32>
    %16 = vector.multi_reduction <add>, %15, %cst_9 [1] : vector<16x16xf32> to vector<16xf32>
    %17 = vector.shape_cast %16 : vector<16xf32> to vector<16x1xf32>
    %18 = vector.broadcast %17 : vector<16x1xf32> to vector<16x16xf32>
    %19 = arith.divf %15, %18 : vector<16x16xf32>
    %cst_10 = arith.constant dense<0.000000e+00> : vector<16x32xf32>
    %20 = tpu.matmul %19, %9, %cst_10 {dimension_numbers = #tpu.dot_dimension_numbers<[1], [0], [0], [1], [0, 0, 1, 1], [], []>} : vector<16x16xf32>, vector<16x32xf32>, vector<16x32xf32> -> vector<16x32xf32>
    %c0_11 = arith.constant 0 : index
    %c0_12 = arith.constant 0 : index
    %21 = vector.load %arg3[%c0_11, %c0_12] : memref<128x128xf32, #tpu.memory_space<vmem>>, vector<32x128xf32>
    %cst_13 = arith.constant dense<0.000000e+00> : vector<16x128xf32>
    %22 = tpu.matmul %20, %21, %cst_13 {dimension_numbers = #tpu.dot_dimension_numbers<[1], [0], [0], [1], [0, 0, 1, 1], [], []>} : vector<16x32xf32>, vector<32x128xf32>, vector<16x128xf32> -> vector<16x128xf32>
    %23 = vector.broadcast %4 : vector<1x128xf32> to vector<16x128xf32>
    %24 = arith.addf %23, %22 : vector<16x128xf32>
    %25 = vector.extract_strided_slice %3 {offsets = [0, 32], sizes = [16, 32], strides = [1, 1]} : vector<16x384xf32> to vector<16x32xf32>
    %cst_14 = arith.constant 0.176776692 : f32
    %26 = vector.broadcast %cst_14 : f32 to vector<16x32xf32>
    %27 = arith.mulf %25, %26 : vector<16x32xf32>
    %28 = vector.extract_strided_slice %3 {offsets = [0, 160], sizes = [16, 32], strides = [1, 1]} : vector<16x384xf32> to vector<16x32xf32>
    %29 = vector.extract_strided_slice %3 {offsets = [0, 288], sizes = [16, 32], strides = [1, 1]} : vector<16x384xf32> to vector<16x32xf32>
    %cst_15 = arith.constant dense<0.000000e+00> : vector<16x16xf32>
    %30 = tpu.matmul %27, %28, %cst_15 {dimension_numbers = #tpu.dot_dimension_numbers<[1], [1], [0], [0], [0, 0, 1, 0], [], []>} : vector<16x32xf32>, vector<16x32xf32>, vector<16x16xf32> -> vector<16x16xf32>
    %cst_16 = arith.constant dense<0xFF800000> : vector<16xf32>
    %31 = vector.multi_reduction <maximumf>, %30, %cst_16 [1] : vector<16x16xf32> to vector<16xf32>
    %32 = vector.shape_cast %31 : vector<16xf32> to vector<16x1xf32>
    %33 = vector.broadcast %32 : vector<16x1xf32> to vector<16x16xf32>
    %34 = arith.subf %30, %33 : vector<16x16xf32>
    %35 = math.exp %34 : vector<16x16xf32>
    %cst_17 = arith.constant dense<0.000000e+00> : vector<16xf32>
    %36 = vector.multi_reduction <add>, %35, %cst_17 [1] : vector<16x16xf32> to vector<16xf32>
    %37 = vector.shape_cast %36 : vector<16xf32> to vector<16x1xf32>
    %38 = vector.broadcast %37 : vector<16x1xf32> to vector<16x16xf32>
    %39 = arith.divf %35, %38 : vector<16x16xf32>
    %cst_18 = arith.constant dense<0.000000e+00> : vector<16x32xf32>
    %40 = tpu.matmul %39, %29, %cst_18 {dimension_numbers = #tpu.dot_dimension_numbers<[1], [0], [0], [1], [0, 0, 1, 1], [], []>} : vector<16x16xf32>, vector<16x32xf32>, vector<16x32xf32> -> vector<16x32xf32>
    %c32 = arith.constant 32 : index
    %c0_19 = arith.constant 0 : index
    %41 = vector.load %arg3[%c32, %c0_19] : memref<128x128xf32, #tpu.memory_space<vmem>>, vector<32x128xf32>
    %cst_20 = arith.constant dense<0.000000e+00> : vector<16x128xf32>
    %42 = tpu.matmul %40, %41, %cst_20 {dimension_numbers = #tpu.dot_dimension_numbers<[1], [0], [0], [1], [0, 0, 1, 1], [], []>} : vector<16x32xf32>, vector<32x128xf32>, vector<16x128xf32> -> vector<16x128xf32>
    %43 = arith.addf %24, %42 : vector<16x128xf32>
    %44 = vector.extract_strided_slice %3 {offsets = [0, 64], sizes = [16, 32], strides = [1, 1]} : vector<16x384xf32> to vector<16x32xf32>
    %cst_21 = arith.constant 0.176776692 : f32
    %45 = vector.broadcast %cst_21 : f32 to vector<16x32xf32>
    %46 = arith.mulf %44, %45 : vector<16x32xf32>
    %47 = vector.extract_strided_slice %3 {offsets = [0, 192], sizes = [16, 32], strides = [1, 1]} : vector<16x384xf32> to vector<16x32xf32>
    %48 = vector.extract_strided_slice %3 {offsets = [0, 320], sizes = [16, 32], strides = [1, 1]} : vector<16x384xf32> to vector<16x32xf32>
    %cst_22 = arith.constant dense<0.000000e+00> : vector<16x16xf32>
    %49 = tpu.matmul %46, %47, %cst_22 {dimension_numbers = #tpu.dot_dimension_numbers<[1], [1], [0], [0], [0, 0, 1, 0], [], []>} : vector<16x32xf32>, vector<16x32xf32>, vector<16x16xf32> -> vector<16x16xf32>
    %cst_23 = arith.constant dense<0xFF800000> : vector<16xf32>
    %50 = vector.multi_reduction <maximumf>, %49, %cst_23 [1] : vector<16x16xf32> to vector<16xf32>
    %51 = vector.shape_cast %50 : vector<16xf32> to vector<16x1xf32>
    %52 = vector.broadcast %51 : vector<16x1xf32> to vector<16x16xf32>
    %53 = arith.subf %49, %52 : vector<16x16xf32>
    %54 = math.exp %53 : vector<16x16xf32>
    %cst_24 = arith.constant dense<0.000000e+00> : vector<16xf32>
    %55 = vector.multi_reduction <add>, %54, %cst_24 [1] : vector<16x16xf32> to vector<16xf32>
    %56 = vector.shape_cast %55 : vector<16xf32> to vector<16x1xf32>
    %57 = vector.broadcast %56 : vector<16x1xf32> to vector<16x16xf32>
    %58 = arith.divf %54, %57 : vector<16x16xf32>
    %cst_25 = arith.constant dense<0.000000e+00> : vector<16x32xf32>
    %59 = tpu.matmul %58, %48, %cst_25 {dimension_numbers = #tpu.dot_dimension_numbers<[1], [0], [0], [1], [0, 0, 1, 1], [], []>} : vector<16x16xf32>, vector<16x32xf32>, vector<16x32xf32> -> vector<16x32xf32>
    %c64 = arith.constant 64 : index
    %c0_26 = arith.constant 0 : index
    %60 = vector.load %arg3[%c64, %c0_26] : memref<128x128xf32, #tpu.memory_space<vmem>>, vector<32x128xf32>
    %cst_27 = arith.constant dense<0.000000e+00> : vector<16x128xf32>
    %61 = tpu.matmul %59, %60, %cst_27 {dimension_numbers = #tpu.dot_dimension_numbers<[1], [0], [0], [1], [0, 0, 1, 1], [], []>} : vector<16x32xf32>, vector<32x128xf32>, vector<16x128xf32> -> vector<16x128xf32>
    %62 = arith.addf %43, %61 : vector<16x128xf32>
    %63 = vector.extract_strided_slice %3 {offsets = [0, 96], sizes = [16, 32], strides = [1, 1]} : vector<16x384xf32> to vector<16x32xf32>
    %cst_28 = arith.constant 0.176776692 : f32
    %64 = vector.broadcast %cst_28 : f32 to vector<16x32xf32>
    %65 = arith.mulf %63, %64 : vector<16x32xf32>
    %66 = vector.extract_strided_slice %3 {offsets = [0, 224], sizes = [16, 32], strides = [1, 1]} : vector<16x384xf32> to vector<16x32xf32>
    %67 = vector.extract_strided_slice %3 {offsets = [0, 352], sizes = [16, 32], strides = [1, 1]} : vector<16x384xf32> to vector<16x32xf32>
    %cst_29 = arith.constant dense<0.000000e+00> : vector<16x16xf32>
    %68 = tpu.matmul %65, %66, %cst_29 {dimension_numbers = #tpu.dot_dimension_numbers<[1], [1], [0], [0], [0, 0, 1, 0], [], []>} : vector<16x32xf32>, vector<16x32xf32>, vector<16x16xf32> -> vector<16x16xf32>
    %cst_30 = arith.constant dense<0xFF800000> : vector<16xf32>
    %69 = vector.multi_reduction <maximumf>, %68, %cst_30 [1] : vector<16x16xf32> to vector<16xf32>
    %70 = vector.shape_cast %69 : vector<16xf32> to vector<16x1xf32>
    %71 = vector.broadcast %70 : vector<16x1xf32> to vector<16x16xf32>
    %72 = arith.subf %68, %71 : vector<16x16xf32>
    %73 = math.exp %72 : vector<16x16xf32>
    %cst_31 = arith.constant dense<0.000000e+00> : vector<16xf32>
    %74 = vector.multi_reduction <add>, %73, %cst_31 [1] : vector<16x16xf32> to vector<16xf32>
    %75 = vector.shape_cast %74 : vector<16xf32> to vector<16x1xf32>
    %76 = vector.broadcast %75 : vector<16x1xf32> to vector<16x16xf32>
    %77 = arith.divf %73, %76 : vector<16x16xf32>
    %cst_32 = arith.constant dense<0.000000e+00> : vector<16x32xf32>
    %78 = tpu.matmul %77, %67, %cst_32 {dimension_numbers = #tpu.dot_dimension_numbers<[1], [0], [0], [1], [0, 0, 1, 1], [], []>} : vector<16x16xf32>, vector<16x32xf32>, vector<16x32xf32> -> vector<16x32xf32>
    %c96 = arith.constant 96 : index
    %c0_33 = arith.constant 0 : index
    %79 = vector.load %arg3[%c96, %c0_33] : memref<128x128xf32, #tpu.memory_space<vmem>>, vector<32x128xf32>
    %cst_34 = arith.constant dense<0.000000e+00> : vector<16x128xf32>
    %80 = tpu.matmul %78, %79, %cst_34 {dimension_numbers = #tpu.dot_dimension_numbers<[1], [0], [0], [1], [0, 0, 1, 1], [], []>} : vector<16x32xf32>, vector<32x128xf32>, vector<16x128xf32> -> vector<16x128xf32>
    %81 = arith.addf %62, %80 : vector<16x128xf32>
    %c0_35 = arith.constant 0 : index
    %c0_36 = arith.constant 0 : index
    %c0_37 = arith.constant 0 : index
    %82 = vector.load %arg5[%c0_35, %c0_36, %c0_37] : memref<1x16x128xf32, #tpu.memory_space<vmem>>, vector<1x16x128xf32>
    %83 = vector.shape_cast %82 : vector<1x16x128xf32> to vector<16x128xf32>
    %84 = vector.shape_cast %81 : vector<16x128xf32> to vector<1x16x128xf32>
    tpu.vector_store %arg5[%c0_35, %c0_36, %c0_37], %84 {strides = array<i32>} : memref<1x16x128xf32, #tpu.memory_space<vmem>>, vector<1x16x128xf32>,
    return
  }
  func.func @transform_0(%arg0: i32) -> (i32, i32, i32) {
    %c0_i32 = arith.constant 0 : i32
    %c0_i32_0 = arith.constant 0 : i32
    %c0_i32_1 = arith.constant 0 : i32
    return %arg0, %c0_i32, %c0_i32_0 : i32, i32, i32
  }
  func.func @transform_1(%arg0: i32) -> (i32, i32) {
    %c0_i32 = arith.constant 0 : i32
    %c0_i32_0 = arith.constant 0 : i32
    %c0_i32_1 = arith.constant 0 : i32
    return %c0_i32, %c0_i32_0 : i32, i32
  }
  func.func @transform_2(%arg0: i32) -> (i32, i32) {
    %c0_i32 = arith.constant 0 : i32
    %c0_i32_0 = arith.constant 0 : i32
    %c0_i32_1 = arith.constant 0 : i32
    return %c0_i32, %c0_i32_0 : i32, i32
  }
  func.func @transform_3(%arg0: i32) -> (i32, i32) {
    %c0_i32 = arith.constant 0 : i32
    %c0_i32_0 = arith.constant 0 : i32
    %c0_i32_1 = arith.constant 0 : i32
    return %c0_i32, %c0_i32_0 : i32, i32
  }
  func.func @transform_4(%arg0: i32) -> (i32, i32, i32) {
    %c0_i32 = arith.constant 0 : i32
    %c0_i32_0 = arith.constant 0 : i32
    %c0_i32_1 = arith.constant 0 : i32
    return %arg0, %c0_i32, %c0_i32_0 : i32, i32, i32
  }
}

</mosaic_0001>

<llo_original>
// kernel: attention_forward.1
$region0: #{attention_forward.1}
  #allocation0 [shape = 'u32[]', space=smem, size = 0x4, offset = 0x4, fixed_abs, tag = 'smem constant byte address 0x4 - core index']
  #allocation1 [shape = 'u32[144,128]{1,0:T(1,128)}', space=vmem, size = 0x12000, scoped, tag = 'internal scratch']
  %s0 = inlined_call_operand.hbm [shape: f32[2,16,128], index: 0, kind: input, shape index: {}]
  %s1 = inlined_call_operand.hbm [shape: f32[128,384], index: 1, kind: input, shape index: {}]
  %s2 = inlined_call_operand.hbm [shape: f32[128,128], index: 2, kind: input, shape index: {}]
  %s3 = inlined_call_operand.vmem [shape: f32[1,128], index: 3, kind: input, shape index: {}]
  %s4 = inlined_call_operand.hbm [shape: f32[2,16,128], index: 4, kind: output, shape index: {}]
  %s5 = sld [smem:[#allocation0]]
  $region61: #{attention_forward.1} parent=0
    _
  %s7 = ssub.s32 1, %s5
  %s8 = scalar_select 0, %s7, %s5
  $region1: #{attention_forward.1} parent=0
    #allocation2 [shape = 'u8[16384]{0}', space=vmem, size = 0x4000, scoped, tag = 'input window, operand 0']
    #allocation3 [shape = 's32[2]{0}', space=sflag, size = 0x8, scoped, tag = 'scoped memory for attention_forward.1']
    #allocation4 [shape = 's32[2]{0}', space=sflag, size = 0x8, scoped, tag = 'scoped memory for attention_forward.1']
    #allocation5 [shape = 'u8[196608]{0}', space=vmem, size = 0x30000, scoped, tag = 'input window, operand 1, single buffered']
    #allocation6 [shape = 's32[1]{0}', space=sflag, size = 0x4, scoped, tag = 'scoped memory for attention_forward.1']
    #allocation7 [shape = 'u8[65536]{0}', space=vmem, size = 0x10000, scoped, tag = 'input window, operand 2, single buffered']
    #allocation8 [shape = 'u8[16384]{0}', space=vmem, size = 0x4000, scoped, tag = 'output window, operand 0']
    %9 = vsyncpa [#allocation3], 0
    %s10 = scalar_lea.sflag [#allocation3], 1
    %11 = vsyncpa %s10, 0
    %12 = vsyncpa [#allocation6], 0
    %13 = vsyncpa [#allocation4], 0
    %s14 = scalar_lea.sflag [#allocation4], 1
    %15 = vsyncpa %s14, 0
    loop: start=0, step=1, limit=4
    $region2: #{attention_forward.1} parent=1 // loop_pre_header
      _
    $region3: #{attention_forward.1} parent=1 // loop_header
      %s17 = sphi 0, %s21
      %p18 = scmp.ge.s32.totalorder %s17, 4
      %s27 = sphi 0, %s29
      %s30 = sphi 0, %s27
      %s31 = sphi 0, %s30
      %s47 = sphi 0, %s31
      %s51 = sphi 0, %s51
      %s53 = sphi 0, %s51
      %s54 = sphi 0, %s53
      %s68 = sphi 0, %s54
      %s72 = sphi 0, %s72
      %s74 = sphi 0, %s72
      %s75 = sphi 0, %s74
      %s89 = sphi 0, %s75
      %s93 = sphi 0, %s93
      %s95 = sphi 0, %s93
      %s96 = sphi 0, %s95
      %s110 = sphi 0, %s96
      %s116 = sphi 0, %s118
      %s119 = sphi 0, %s116
      %s120 = sphi 0, %s119
      %s136 = sphi 0, %s120
    $region4: #{attention_forward.1} parent=1 // loop_header_branch
      %20 = sbr.rel (%p18) target = $region8
    $region5: #{attention_forward.1} parent=1 // loop_body
      %s22 = ssub.s32 %s17, 1
      %s23 = ssub.s32 %s17, 2
      %s24 = sadd.s32 %s17, 1
      %s25 = ssub.s32 %s17, %s24
      %p26 = scmp.eq.s32.totalorder %s25, 0
      %s28 = sadd.s32 %s27, 1
      %s29 = scalar_select %p26, %s27, %s28
      %p32 = pneg %p26
      %p33 = scmp.eq.s32.totalorder %s17, 1
      %p34 = por %p32, %p33
      %p35 = scmp.ne.s32.totalorder %s27, %s30
      %p36 = scmp.eq.s32.totalorder %s17, 0
      %p37 = por %p35, %p36
      %p38 = scmp.ne.s32.totalorder %s27, %s30
      %p39 = scmp.eq.s32.totalorder %s22, 1
      %p40 = por %p38, %p39
      %p41 = scmp.ne.s32.totalorder %s30, %s31
      %p42 = scmp.eq.s32.totalorder %s22, 0
      %p43 = por %p41, %p42
      %p44 = scmp.ne.s32.totalorder %s30, %s31
      %p45 = scmp.eq.s32.totalorder %s23, 1
      %p46 = por %p44, %p45
      %p48 = scmp.ne.s32.totalorder %s31, %s47
      %p49 = scmp.eq.s32.totalorder %s23, 0
      %p50 = por %p48, %p49
      %s52 = sadd.s32 %s51, 1
      %p55 = scmp.eq.s32.totalorder %s17, 1
      %p56 = scmp.ne.s32.totalorder %s51, %s53
      %p57 = scmp.eq.s32.totalorder %s17, 0
      %p58 = por %p56, %p57
      %p59 = scmp.ne.s32.totalorder %s51, %s53
      %p60 = scmp.eq.s32.totalorder %s22, 1
      %p61 = por %p59, %p60
      %p62 = scmp.ne.s32.totalorder %s53, %s54
      %p63 = scmp.eq.s32.totalorder %s22, 0
      %p64 = por %p62, %p63
      %p65 = scmp.ne.s32.totalorder %s53, %s54
      %p66 = scmp.eq.s32.totalorder %s23, 1
      %p67 = por %p65, %p66
      %p69 = scmp.ne.s32.totalorder %s54, %s68
      %p70 = scmp.eq.s32.totalorder %s23, 0
      %p71 = por %p69, %p70
      %s73 = sadd.s32 %s72, 1
      %p76 = scmp.eq.s32.totalorder %s17, 1
      %p77 = scmp.ne.s32.totalorder %s72, %s74
      %p78 = scmp.eq.s32.totalorder %s17, 0
      %p79 = por %p77, %p78
      %p80 = scmp.ne.s32.totalorder %s72, %s74
      %p81 = scmp.eq.s32.totalorder %s22, 1
      %p82 = por %p80, %p81
      %p83 = scmp.ne.s32.totalorder %s74, %s75
      %p84 = scmp.eq.s32.totalorder %s22, 0
      %p85 = por %p83, %p84
      %p86 = scmp.ne.s32.totalorder %s74, %s75
      %p87 = scmp.eq.s32.totalorder %s23, 1
      %p88 = por %p86, %p87
      %p90 = scmp.ne.s32.totalorder %s75, %s89
      %p91 = scmp.eq.s32.totalorder %s23, 0
      %p92 = por %p90, %p91
      %s94 = sadd.s32 %s93, 1
      %p97 = scmp.eq.s32.totalorder %s17, 1
      %p98 = scmp.ne.s32.totalorder %s93, %s95
      %p99 = scmp.eq.s32.totalorder %s17, 0
      %p100 = por %p98, %p99
      %p101 = scmp.ne.s32.totalorder %s93, %s95
      %p102 = scmp.eq.s32.totalorder %s22, 1
      %p103 = por %p101, %p102
      %p104 = scmp.ne.s32.totalorder %s95, %s96
      %p105 = scmp.eq.s32.totalorder %s22, 0
      %p106 = por %p104, %p105
      %p107 = scmp.ne.s32.totalorder %s95, %s96
      %p108 = scmp.eq.s32.totalorder %s23, 1
      %p109 = por %p107, %p108
      %p111 = scmp.ne.s32.totalorder %s96, %s110
      %p112 = scmp.eq.s32.totalorder %s23, 0
      %p113 = por %p111, %p112
      %s114 = ssub.s32 %s17, %s24
      %p115 = scmp.eq.s32.totalorder %s114, 0
      %s117 = sadd.s32 %s116, 1
      %s118 = scalar_select %p115, %s116, %s117
      %p121 = pneg %p115
      %p122 = scmp.eq.s32.totalorder %s17, 1
      %p123 = por %p121, %p122
      %p124 = scmp.ne.s32.totalorder %s116, %s119
      %p125 = scmp.eq.s32.totalorder %s17, 0
      %p126 = por %p124, %p125
      %p127 = scmp.ne.s32.totalorder %s116, %s119
      %p128 = scmp.eq.s32.totalorder %s22, 1
      %p129 = por %p127, %p128
      %p130 = scmp.ne.s32.totalorder %s119, %s120
      %p131 = scmp.eq.s32.totalorder %s22, 0
      %p132 = por %p130, %p131
      %p133 = scmp.ne.s32.totalorder %s119, %s120
      %p134 = scmp.eq.s32.totalorder %s23, 1
      %p135 = por %p133, %p134
      %p137 = scmp.ne.s32.totalorder %s120, %s136
      %p138 = scmp.eq.s32.totalorder %s23, 0
      %p139 = por %p137, %p138
      %p140 = scmp.le.s32.totalorder 1, %s17
      %p141 = scmp.lt.s32.totalorder %s17, 3
      %p142 = pnand %p140, %p141
      %p143 = pneg %p142
      // Predicated region
      $region9: #{attention_forward.1} parent=5 // pred_check
        _
      $region10: #{attention_forward.1} parent=5 // pred_check_branch
        %145 = sbr.rel (%p142) target = $region12
      $region11: #{attention_forward.1} parent=5 // pred_region
        %s146 = ssub.s32 %s17, 1
        // Predicated region
        $region13: #{attention_forward.1} parent=11 // pred_check
          %p147 = pneg %p64
        $region14: #{attention_forward.1} parent=11 // pred_check_branch
          %149 = sbr.rel (%p147) target = $region16
        $region15: #{attention_forward.1} parent=11 // pred_region
          %s151 = ssub.s32 6144, 6144
          %152 = vsyncadd [#allocation6], %s151
          %s153 = sshll.u32 [#allocation5], 4
          %s154 = int_to_ptr.vmem [resolvable:$true] %s153
          %159 = dma.hbm_to_vmem [thread:$0]  %s1, 6144, %s154, [#allocation6], 384, 384, 24
        $region16: #{attention_forward.1} parent=11 // pred_fallthru
          _
        // Predicated region
        $region17: #{attention_forward.1} parent=11 // pred_check
          %p160 = pneg %p85
        $region18: #{attention_forward.1} parent=11 // pred_check_branch
          %162 = sbr.rel (%p160) target = $region20
        $region19: #{attention_forward.1} parent=11 // pred_region
          %s164 = ssub.s32 2048, 2048
          %165 = vsyncadd [#allocation6], %s164
          %s166 = sshll.u32 [#allocation7], 4
          %s167 = int_to_ptr.vmem [resolvable:$true] %s166
          %172 = dma.hbm_to_vmem [thread:$0]  %s2, 2048, %s167, [#allocation6], 128, 128, 8
        $region20: #{attention_forward.1} parent=11 // pred_fallthru
          _
        // Predicated region
        $region21: #{attention_forward.1} parent=11 // pred_check
          %p173 = pneg %p106
        $region22: #{attention_forward.1} parent=11 // pred_check_branch
          %175 = sbr.rel (%p173) target = $region24
        $region23: #{attention_forward.1} parent=11 // pred_region
          _
        $region24: #{attention_forward.1} parent=11 // pred_fallthru
          _
      $region12: #{attention_forward.1} parent=5 // pred_fallthru
        _
      %p176 = scmp.lt.s32.totalorder %s17, 2
      // Predicated region
      $region25: #{attention_forward.1} parent=5 // pred_check
        %p177 = pneg %p176
      $region26: #{attention_forward.1} parent=5 // pred_check_branch
        %179 = sbr.rel (%p177) target = $region28
      $region27: #{attention_forward.1} parent=5 // pred_region
        // Predicated region
        $region29: #{attention_forward.1} parent=27 // pred_check
          %p180 = pneg %p37
        $region30: #{attention_forward.1} parent=27 // pred_check_branch
          %182 = sbr.rel (%p180) target = $region32
        $region31: #{attention_forward.1} parent=27 // pred_region
          %s183 = sand.u32 %s27, 1
          %s184 = scalar_lea.sflag [#allocation3], %s183
          %s185 = sand.u32 %s27, 1
          %s186 = smul.addr %s185, 16
          %s187 = scalar_lea.vmem [#allocation2], %s186
          %s189 = ssub.s32 256, 256
          %190 = vsyncadd %s184, %s189
          %s191 = smul.addr %s17, 2
          %s192 = smul.addr %s191, 128
          %s193 = scalar_lea.hbm %s0, %s192
          %s194 = sshll.u32 %s187, 4
          %s195 = int_to_ptr.vmem [resolvable:$true] %s194
          %200 = dma.hbm_to_vmem [thread:$0]  %s193, 256, %s195, %s184, 128, 128, 8
        $region32: #{attention_forward.1} parent=27 // pred_fallthru
          _
      $region28: #{attention_forward.1} parent=5 // pred_fallthru
        _
      %p201 = scmp.le.s32.totalorder 1, %s17
      %p202 = scmp.lt.s32.totalorder %s17, 3
      %p203 = pnand %p201, %p202
      %p204 = pneg %p203
      // Predicated region
      $region33: #{attention_forward.1} parent=5 // pred_check
        _
      $region34: #{attention_forward.1} parent=5 // pred_check_branch
        %206 = sbr.rel (%p203) target = $region36
      $region35: #{attention_forward.1} parent=5 // pred_region
        %s207 = ssub.s32 %s17, 1
        %s208 = sand.u32 %s30, 1
        %s209 = scalar_lea.sflag [#allocation3], %s208
        %s210 = sand.u32 %s30, 1
        %s211 = smul.addr %s210, 16
        %s212 = scalar_lea.vmem [#allocation2], %s211
        // Predicated region
        $region37: #{attention_forward.1} parent=35 // pred_check
          %p213 = pneg %p43
        $region38: #{attention_forward.1} parent=35 // pred_check_branch
          %215 = sbr.rel (%p213) target = $region40
        $region39: #{attention_forward.1} parent=35 // pred_region
          %216 = dma.done %s209, 256
        $region40: #{attention_forward.1} parent=35 // pred_fallthru
          _
        // Predicated region
        $region41: #{attention_forward.1} parent=35 // pred_check
          %p217 = pneg %p64
        $region42: #{attention_forward.1} parent=35 // pred_check_branch
          %219 = sbr.rel (%p217) target = $region44
        $region43: #{attention_forward.1} parent=35 // pred_region
          %220 = dma.done [#allocation6], 6144
        $region44: #{attention_forward.1} parent=35 // pred_fallthru
          _
        // Predicated region
        $region45: #{attention_forward.1} parent=35 // pred_check
          %p221 = pneg %p85
        $region46: #{attention_forward.1} parent=35 // pred_check_branch
          %223 = sbr.rel (%p221) target = $region48
        $region47: #{attention_forward.1} parent=35 // pred_region
          %224 = dma.done [#allocation6], 2048
        $region48: #{attention_forward.1} parent=35 // pred_fallthru
          _
        %s225 = sand.u32 %s30, 1
        %s226 = scalar_lea.sflag [#allocation3], %s225
        %s227 = sand.u32 %s30, 1
        %s228 = smul.addr %s227, 16
        %s229 = scalar_lea.vmem [#allocation2], %s228
        %p230 = pneg %p43
        %p231 = pneg %p40
        %p232 = pneg %p64
        %p233 = pneg %p61
        %p234 = pneg %p85
        %p235 = pneg %p82
        %p236 = pneg %p106
        %p237 = pneg %p103
        %p238 = pneg %p132
        %p239 = pneg %p129
        %s240 = sand.u32 %s119, 1
        %s241 = scalar_lea.sflag [#allocation4], %s240
        %s242 = sand.u32 %s119, 1
        %s243 = smul.addr %s242, 16
        %s244 = scalar_lea.vmem [#allocation8], %s243
        %v245 = vld [vmem:[%s212] sm:$0xff]
        %v246 = vld [vmem:[%s212 + $0x8] sm:$0xff]
        %v247 = vld [vmem:[#allocation5] sm:$0xff]
        %v248 = vld [vmem:[#allocation5 + $0x8] sm:$0xff]
        %v249 = vld [vmem:[#allocation5 + $0x10] sm:$0xff]
        %v250 = vld [vmem:[#allocation5 + $0x18] sm:$0xff]
        %v251 = vld [vmem:[#allocation5 + $0x20] sm:$0xff]
        %v252 = vld [vmem:[#allocation5 + $0x28] sm:$0xff]
        %v253 = vld [vmem:[#allocation5 + $0x30] sm:$0xff]
        %v254 = vld [vmem:[#allocation5 + $0x38] sm:$0xff]
        %v255 = vld [vmem:[#allocation5 + $0x40] sm:$0xff]
        %v256 = vld [vmem:[#allocation5 + $0x48] sm:$0xff]
        %v257 = vld [vmem:[#allocation5 + $0x50] sm:$0xff]
        %v258 = vld [vmem:[#allocation5 + $0x58] sm:$0xff]
        %v259 = vld [vmem:[#allocation5 + $0x60] sm:$0xff]
        %v260 = vld [vmem:[#allocation5 + $0x68] sm:$0xff]
        %v261 = vld [vmem:[#allocation5 + $0x70] sm:$0xff]
        %v262 = vld [vmem:[#allocation5 + $0x78] sm:$0xff]
        %v263 = vld [vmem:[#allocation5 + $0x80] sm:$0xff]
        %v264 = vld [vmem:[#allocation5 + $0x88] sm:$0xff]
        %v265 = vld [vmem:[#allocation5 + $0x90] sm:$0xff]
        %v266 = vld [vmem:[#allocation5 + $0x98] sm:$0xff]
        %v267 = vld [vmem:[#allocation5 + $0xa0] sm:$0xff]
        %v268 = vld [vmem:[#allocation5 + $0xa8] sm:$0xff]
        %v269 = vld [vmem:[#allocation5 + $0xb0] sm:$0xff]
        %v270 = vld [vmem:[#allocation5 + $0xb8] sm:$0xff]
        %v271 = vld [vmem:[#allocation5 + $0xc0] sm:$0xff]
        %v272 = vld [vmem:[#allocation5 + $0xc8] sm:$0xff]
        %v273 = vld [vmem:[#allocation5 + $0xd0] sm:$0xff]
        %v274 = vld [vmem:[#allocation5 + $0xd8] sm:$0xff]
        %v275 = vld [vmem:[#allocation5 + $0xe0] sm:$0xff]
        %v276 = vld [vmem:[#allocation5 + $0xe8] sm:$0xff]
        %v277 = vld [vmem:[#allocation5 + $0xf0] sm:$0xff]
        %v278 = vld [vmem:[#allocation5 + $0xf8] sm:$0xff]
        %v279 = vld [vmem:[#allocation5 + $0x100] sm:$0xff]
        %v280 = vld [vmem:[#allocation5 + $0x108] sm:$0xff]
        %v281 = vld [vmem:[#allocation5 + $0x110] sm:$0xff]
        %v282 = vld [vmem:[#allocation5 + $0x118] sm:$0xff]
        %v283 = vld [vmem:[#allocation5 + $0x120] sm:$0xff]
        %v284 = vld [vmem:[#allocation5 + $0x128] sm:$0xff]
        %v285 = vld [vmem:[#allocation5 + $0x130] sm:$0xff]
        %v286 = vld [vmem:[#allocation5 + $0x138] sm:$0xff]
        %v287 = vld [vmem:[#allocation5 + $0x140] sm:$0xff]
        %v288 = vld [vmem:[#allocation5 + $0x148] sm:$0xff]
        %v289 = vld [vmem:[#allocation5 + $0x150] sm:$0xff]
        %v290 = vld [vmem:[#allocation5 + $0x158] sm:$0xff]
        %v291 = vld [vmem:[#allocation5 + $0x160] sm:$0xff]
        %v292 = vld [vmem:[#allocation5 + $0x168] sm:$0xff]
        %v293 = vld [vmem:[#allocation5 + $0x170] sm:$0xff]
        %v294 = vld [vmem:[#allocation5 + $0x178] sm:$0xff]
        %295 = vmatprep.subr.mxu0 %v293
        %296 = vmatpush1.msra.mxu0 %v292
        %297 = vmatprep.subr.mxu0 %v290
        %298 = vmatpush1.msra.mxu0 %v289
        %299 = vmatprep.subr.mxu0 %v287
        %300 = vmatpush1.msra.mxu0 %v286
        %301 = vmatprep.subr.mxu0 %v284
        %302 = vmatpush1.msra.mxu0 %v283
        %303 = vmatprep.subr.mxu0 %v281
        %304 = vmatpush1.msra.mxu0 %v280
        %305 = vmatprep.subr.mxu0 %v278
        %306 = vmatpush1.msra.mxu0 %v277
        %307 = vmatprep.subr.mxu0 %v275
        %308 = vmatpush1.msra.mxu0 %v274
        %309 = vmatprep.subr.mxu0 %v272
        %310 = vmatpush1.msra.mxu0 %v271
        %311 = vmatprep.subr.mxu0 %v269
        %312 = vmatpush1.msra.mxu0 %v268
        %313 = vmatprep.subr.mxu0 %v266
        %314 = vmatpush1.msra.mxu0 %v265
        %315 = vmatprep.subr.mxu0 %v263
        %316 = vmatpush1.msra.mxu0 %v262
        %317 = vmatprep.subr.mxu0 %v260
        %318 = vmatpush1.msra.mxu0 %v259
        %319 = vmatprep.subr.mxu0 %v257
        %320 = vmatpush1.msra.mxu0 %v256
        %321 = vmatprep.subr.mxu0 %v254
        %322 = vmatpush1.msra.mxu0 %v253
        %323 = vmatprep.subr.mxu0 %v251
        %324 = vmatpush1.msra.mxu0 %v250
        %325 = vmatprep.subr.mxu0 %v248
        %326 = vmatpush1.msra.mxu0 %v247
        %327 = vmatprep.subr.mxu0 0.0
        %328 = vmatpush2.msra.mxu0 0.0
        %329 = vmatprep.subr.mxu0 0.0
        %330 = vmatpush2.msra.mxu0 0.0
        %331 = vmatprep.subr.mxu0 0.0
        %332 = vmatpush2.msra.mxu0 0.0
        %333 = vmatprep.subr.mxu0 0.0
        %334 = vmatpush2.msra.mxu0 0.0
        %335 = vmatprep.subr.mxu0 0.0
        %336 = vmatpush2.msra.mxu0 0.0
        %337 = vmatprep.subr.mxu0 0.0
        %338 = vmatpush2.msra.mxu0 0.0
        %339 = vmatprep.subr.mxu0 0.0
        %340 = vmatpush2.msra.mxu0 0.0
        %341 = vmatprep.subr.mxu0 0.0
        %342 = vmatpush2.msra.mxu0 0.0
        %343 = vmatprep.subr.mxu0 0.0
        %344 = vmatpush2.msra.mxu0 0.0
        %345 = vmatprep.subr.mxu0 0.0
        %346 = vmatpush2.msra.mxu0 0.0
        %347 = vmatprep.subr.mxu0 0.0
        %348 = vmatpush2.msra.mxu0 0.0
        %349 = vmatprep.subr.mxu0 0.0
        %350 = vmatpush2.msra.mxu0 0.0
        %351 = vmatprep.subr.mxu0 0.0
        %352 = vmatpush2.msra.mxu0 0.0
        %353 = vmatprep.subr.mxu0 0.0
        %354 = vmatpush2.msra.mxu0 0.0
        %355 = vmatprep.subr.mxu0 0.0
        %356 = vmatpush2.msra.mxu0 0.0
        %357 = vmatprep.subr.mxu0 0.0
        %358 = vmatpush2.msra.mxu0 0.0
        %359 = vmatprep.mubr.f32.mxu0 0.0
        %360 = vmatmul.mubr.f32.gmra.mxu0 %v245
        %v361 = vpop.f32.mrf.mxu0
        %v362 = vadd.f32 0.0, %v361
        %v363 = vpop.f32.mrf.mxu0
        %v364 = vadd.f32 0.0, %v363
        %365 = vmatprep.mubr.f32.mxu0 0.0
        %366 = vmatmul.mubr.f32.gmra.mxu0 %v246
        %v367 = vpop.f32.mrf.mxu0
        %v368 = vadd.f32 0.0, %v367
        %v369 = vpop.f32.mrf.mxu0
        %v370 = vadd.f32 0.0, %v369
        %371 = vdwg.mxu0
        %372 = vmatprep.subr.mxu0 0.0
        %373 = vmatpush1.msra.mxu0 %v294
        %374 = vmatprep.subr.mxu0 0.0
        %375 = vmatpush1.msra.mxu0 %v291
        %376 = vmatprep.subr.mxu0 0.0
        %377 = vmatpush1.msra.mxu0 %v288
        %378 = vmatprep.subr.mxu0 0.0
        %379 = vmatpush1.msra.mxu0 %v285
        %380 = vmatprep.subr.mxu0 0.0
        %381 = vmatpush1.msra.mxu0 %v282
        %382 = vmatprep.subr.mxu0 0.0
        %383 = vmatpush1.msra.mxu0 %v279
        %384 = vmatprep.subr.mxu0 0.0
        %385 = vmatpush1.msra.mxu0 %v276
        %386 = vmatprep.subr.mxu0 0.0
        %387 = vmatpush1.msra.mxu0 %v273
        %388 = vmatprep.subr.mxu0 0.0
        %389 = vmatpush1.msra.mxu0 %v270
        %390 = vmatprep.subr.mxu0 0.0
        %391 = vmatpush1.msra.mxu0 %v267
        %392 = vmatprep.subr.mxu0 0.0
        %393 = vmatpush1.msra.mxu0 %v264
        %394 = vmatprep.subr.mxu0 0.0
        %395 = vmatpush1.msra.mxu0 %v261
        %396 = vmatprep.subr.mxu0 0.0
        %397 = vmatpush1.msra.mxu0 %v258
        %398 = vmatprep.subr.mxu0 0.0
        %399 = vmatpush1.msra.mxu0 %v255
        %400 = vmatprep.subr.mxu0 0.0
        %401 = vmatpush1.msra.mxu0 %v252
        %402 = vmatprep.subr.mxu0 0.0
        %403 = vmatpush1.msra.mxu0 %v249
        %404 = vmatprep.subr.mxu0 0.0
        %405 = vmatpush2.msra.mxu0 0.0
        %406 = vmatprep.subr.mxu0 0.0
        %407 = vmatpush2.msra.mxu0 0.0
        %408 = vmatprep.subr.mxu0 0.0
        %409 = vmatpush2.msra.mxu0 0.0
        %410 = vmatprep.subr.mxu0 0.0
        %411 = vmatpush2.msra.mxu0 0.0
        %412 = vmatprep.subr.mxu0 0.0
        %413 = vmatpush2.msra.mxu0 0.0
        %414 = vmatprep.subr.mxu0 0.0
        %415 = vmatpush2.msra.mxu0 0.0
        %416 = vmatprep.subr.mxu0 0.0
        %417 = vmatpush2.msra.mxu0 0.0
        %418 = vmatprep.subr.mxu0 0.0
        %419 = vmatpush2.msra.mxu0 0.0
        %420 = vmatprep.subr.mxu0 0.0
        %421 = vmatpush2.msra.mxu0 0.0
        %422 = vmatprep.subr.mxu0 0.0
        %423 = vmatpush2.msra.mxu0 0.0
        %424 = vmatprep.subr.mxu0 0.0
        %425 = vmatpush2.msra.mxu0 0.0
        %426 = vmatprep.subr.mxu0 0.0
        %427 = vmatpush2.msra.mxu0 0.0
        %428 = vmatprep.subr.mxu0 0.0
        %429 = vmatpush2.msra.mxu0 0.0
        %430 = vmatprep.subr.mxu0 0.0
        %431 = vmatpush2.msra.mxu0 0.0
        %432 = vmatprep.subr.mxu0 0.0
        %433 = vmatpush2.msra.mxu0 0.0
        %434 = vmatprep.subr.mxu0 0.0
        %435 = vmatpush2.msra.mxu0 0.0
        %436 = vmatprep.mubr.f32.mxu0 0.0
        %437 = vmatmul.mubr.f32.gmra.mxu0 %v245
        %v438 = vpop.f32.mrf.mxu0
        %v439 = vadd.f32 0.0, %v438
        %v440 = vpop.f32.mrf.mxu0
        %441 = vmatprep.mubr.f32.mxu0 0.0
        %442 = vmatmul.mubr.f32.gmra.mxu0 %v246
        %v443 = vpop.f32.mrf.mxu0
        %v444 = vadd.f32 0.0, %v443
        %v445 = vpop.f32.mrf.mxu0
        %446 = vdwg.mxu0
        %v447 = vld [vmem:[%s3] sm:$0x1]
        %v448 = vmul.f32 %v362, 0.17677669
        %v449 = vmul.f32 %v368, 0.17677669
        %vm450 = vcmask 261120
        %v452 = vsel %vm450, %v448, 0
        %v455 = vsel %vm450, %v449, 0
        %v458 = vsel %vm450, %v364, 0
        %v461 = vsel %vm450, %v370, 0
        %463 = vmatprep.subr.mxu0 0.0
        %464 = vmatpush1.xpose.msra.mxu0 0.0
        %465 = vmatprep.subr.mxu0 0.0
        %466 = vmatpush1.xpose.msra.mxu0 0.0
        %467 = vmatprep.subr.mxu0 0.0
        %468 = vmatpush1.xpose.msra.mxu0 0.0
        %469 = vmatprep.subr.mxu0 0.0
        %470 = vmatpush1.xpose.msra.mxu0 0.0
        %471 = vmatprep.subr.mxu0 0.0
        %472 = vmatpush1.xpose.msra.mxu0 0.0
        %473 = vmatprep.subr.mxu0 0.0
        %474 = vmatpush1.xpose.msra.mxu0 0.0
        %475 = vmatprep.subr.mxu0 0.0
        %476 = vmatpush1.xpose.msra.mxu0 0.0
        %477 = vmatprep.subr.mxu0 0.0
        %478 = vmatpush1.xpose.msra.mxu0 0.0
        %479 = vmatprep.subr.mxu0 0.0
        %480 = vmatpush1.xpose.msra.mxu0 0.0
        %481 = vmatprep.subr.mxu0 0.0
        %482 = vmatpush1.xpose.msra.mxu0 0.0
        %483 = vmatprep.subr.mxu0 0.0
        %484 = vmatpush1.xpose.msra.mxu0 0.0
        %485 = vmatprep.subr.mxu0 0.0
        %486 = vmatpush1.xpose.msra.mxu0 0.0
        %487 = vmatprep.subr.mxu0 0.0
        %488 = vmatpush1.xpose.msra.mxu0 0.0
        %489 = vmatprep.subr.mxu0 0.0
        %490 = vmatpush1.xpose.msra.mxu0 0.0
        %491 = vmatprep.subr.mxu0 0.0
        %492 = vmatpush1.xpose.msra.mxu0 %v461
        %493 = vmatprep.subr.mxu0 0.0
        %494 = vmatpush1.xpose.msra.mxu0 %v458
        %495 = vmatprep.subr.mxu0 0.0
        %496 = vmatpush2.xpose.msra.mxu0 0.0
        %497 = vmatprep.subr.mxu0 0.0
        %498 = vmatpush2.xpose.msra.mxu0 0.0
        %499 = vmatprep.subr.mxu0 0.0
        %500 = vmatpush2.xpose.msra.mxu0 0.0
        %501 = vmatprep.subr.mxu0 0.0
        %502 = vmatpush2.xpose.msra.mxu0 0.0
        %503 = vmatprep.subr.mxu0 0.0
        %504 = vmatpush2.xpose.msra.mxu0 0.0
        %505 = vmatprep.subr.mxu0 0.0
        %506 = vmatpush2.xpose.msra.mxu0 0.0
        %507 = vmatprep.subr.mxu0 0.0
        %508 = vmatpush2.xpose.msra.mxu0 0.0
        %509 = vmatprep.subr.mxu0 0.0
        %510 = vmatpush2.xpose.msra.mxu0 0.0
        %511 = vmatprep.subr.mxu0 0.0
        %512 = vmatpush2.xpose.msra.mxu0 0.0
        %513 = vmatprep.subr.mxu0 0.0
        %514 = vmatpush2.xpose.msra.mxu0 0.0
        %515 = vmatprep.subr.mxu0 0.0
        %516 = vmatpush2.xpose.msra.mxu0 0.0
        %517 = vmatprep.subr.mxu0 0.0
        %518 = vmatpush2.xpose.msra.mxu0 0.0
        %519 = vmatprep.subr.mxu0 0.0
        %520 = vmatpush2.xpose.msra.mxu0 0.0
        %521 = vmatprep.subr.mxu0 0.0
        %522 = vmatpush2.xpose.msra.mxu0 0.0
        %523 = vmatprep.subr.mxu0 0.0
        %524 = vmatpush2.xpose.msra.mxu0 0.0
        %525 = vmatprep.subr.mxu0 0.0
        %526 = vmatpush2.xpose.msra.mxu0 0.0
        %527 = vmatprep.mubr.f32.mxu0 0.0
        %528 = vmatmul.mubr.f32.gmra.mxu0 %v452
        %v529 = vpop.f32.mrf.mxu0
        %v530 = vadd.f32 0.0, %v529
        %v531 = vpop.f32.mrf.mxu0
        %532 = vmatprep.mubr.f32.mxu0 0.0
        %533 = vmatmul.mubr.f32.gmra.mxu0 %v455
        %v534 = vpop.f32.mrf.mxu0
        %v535 = vadd.f32 0.0, %v534
        %v536 = vpop.f32.mrf.mxu0
        %537 = vdwg.mxu0
        %vm538 = vcmask 130048
        %v539 = vsel %vm538, %v530, -inf
        %540 = vmax.xlane.f32.xlu0 %v539
        %v541 = vpop.xlane.xlu0 %540
        %v542 = vsel %vm538, %v535, -inf
        %543 = vmax.xlane.f32.xlu0 %v542
        %v544 = vpop.xlane.xlu0 %543
        %v545 = vsub.f32 %v530, %v541
        %v546 = vsub.f32 %v535, %v544
        %v547 = vmul.f32 %v545, 1.442695
        %v548 = vpow.pop %v547
        %v549 = vmul.f32 %v546, 1.442695
        %v550 = vpow.pop %v549
        %v551 = vsel %vm538, %v548, 0.0
        %552 = vadd.xlane.f32.xlu0 %v551
        %v553 = vpop.xlane.xlu0 %552
        %v554 = vsel %vm538, %v550, 0.0
        %555 = vadd.xlane.f32.xlu0 %v554
        %v556 = vpop.xlane.xlu0 %555
        %v557 = vrcp.pop %v553
        %v558 = vmul.f32 %v548, %v557
        %v559 = vrcp.pop %v556
        %v560 = vmul.f32 %v550, %v559
        %v562 = vsel %vm538, %v558, 0
        %v565 = vsel %vm538, %v560, 0
        %567 = vmatprep.subr.mxu0 0.0
        %568 = vmatpush1.msra.mxu0 0.0
        %569 = vmatprep.subr.mxu0 0.0
        %570 = vmatpush1.msra.mxu0 0.0
        %571 = vmatprep.subr.mxu0 0.0
        %572 = vmatpush1.msra.mxu0 0.0
        %573 = vmatprep.subr.mxu0 0.0
        %574 = vmatpush1.msra.mxu0 0.0
        %575 = vmatprep.subr.mxu0 0.0
        %576 = vmatpush1.msra.mxu0 0.0
        %577 = vmatprep.subr.mxu0 0.0
        %578 = vmatpush1.msra.mxu0 0.0
        %579 = vmatprep.subr.mxu0 0.0
        %580 = vmatpush1.msra.mxu0 0.0
        %581 = vmatprep.subr.mxu0 0.0
        %582 = vmatpush1.msra.mxu0 0.0
        %583 = vmatprep.subr.mxu0 0.0
        %584 = vmatpush1.msra.mxu0 0.0
        %585 = vmatprep.subr.mxu0 0.0
        %586 = vmatpush1.msra.mxu0 0.0
        %587 = vmatprep.subr.mxu0 0.0
        %588 = vmatpush1.msra.mxu0 0.0
        %589 = vmatprep.subr.mxu0 0.0
        %590 = vmatpush1.msra.mxu0 0.0
        %591 = vmatprep.subr.mxu0 0.0
        %592 = vmatpush1.msra.mxu0 0.0
        %593 = vmatprep.subr.mxu0 0.0
        %594 = vmatpush1.msra.mxu0 0.0
        %595 = vmatprep.subr.mxu0 0.0
        %596 = vmatpush1.msra.mxu0 %v444
        %597 = vmatprep.subr.mxu0 0.0
        %598 = vmatpush1.msra.mxu0 %v439
        %599 = vmatprep.subr.mxu0 0.0
        %600 = vmatpush2.msra.mxu0 0.0
        %601 = vmatprep.subr.mxu0 0.0
        %602 = vmatpush2.msra.mxu0 0.0
        %603 = vmatprep.subr.mxu0 0.0
        %604 = vmatpush2.msra.mxu0 0.0
        %605 = vmatprep.subr.mxu0 0.0
        %606 = vmatpush2.msra.mxu0 0.0
        %607 = vmatprep.subr.mxu0 0.0
        %608 = vmatpush2.msra.mxu0 0.0
        %609 = vmatprep.subr.mxu0 0.0
        %610 = vmatpush2.msra.mxu0 0.0
        %611 = vmatprep.subr.mxu0 0.0
        %612 = vmatpush2.msra.mxu0 0.0
        %613 = vmatprep.subr.mxu0 0.0
        %614 = vmatpush2.msra.mxu0 0.0
        %615 = vmatprep.subr.mxu0 0.0
        %616 = vmatpush2.msra.mxu0 0.0
        %617 = vmatprep.subr.mxu0 0.0
        %618 = vmatpush2.msra.mxu0 0.0
        %619 = vmatprep.subr.mxu0 0.0
        %620 = vmatpush2.msra.mxu0 0.0
        %621 = vmatprep.subr.mxu0 0.0
        %622 = vmatpush2.msra.mxu0 0.0
        %623 = vmatprep.subr.mxu0 0.0
        %624 = vmatpush2.msra.mxu0 0.0
        %625 = vmatprep.subr.mxu0 0.0
        %626 = vmatpush2.msra.mxu0 0.0
        %627 = vmatprep.subr.mxu0 0.0
        %628 = vmatpush2.msra.mxu0 0.0
        %629 = vmatprep.subr.mxu0 0.0
        %630 = vmatpush2.msra.mxu0 0.0
        %631 = vmatprep.mubr.f32.mxu0 0.0
        %632 = vmatmul.mubr.f32.gmra.mxu0 %v562
        %v633 = vpop.f32.mrf.mxu0
        %v634 = vadd.f32 0.0, %v633
        %v635 = vpop.f32.mrf.mxu0
        %636 = vmatprep.mubr.f32.mxu0 0.0
        %637 = vmatmul.mubr.f32.gmra.mxu0 %v565
        %v638 = vpop.f32.mrf.mxu0
        %v639 = vadd.f32 0.0, %v638
        %v640 = vpop.f32.mrf.mxu0
        %641 = vdwg.mxu0
        %v642 = vld [vmem:[#allocation7] sm:$0xff]
        %v643 = vld [vmem:[#allocation7 + $0x8] sm:$0xff]
        %v644 = vld [vmem:[#allocation7 + $0x10] sm:$0xff]
        %v645 = vld [vmem:[#allocation7 + $0x18] sm:$0xff]
        %v647 = vsel %vm450, %v634, 0
        %v650 = vsel %vm450, %v639, 0
        %652 = vmatprep.subr.mxu0 0.0
        %653 = vmatpush1.msra.mxu0 0.0
        %654 = vmatprep.subr.mxu0 0.0
        %655 = vmatpush1.msra.mxu0 0.0
        %656 = vmatprep.subr.mxu0 0.0
        %657 = vmatpush1.msra.mxu0 0.0
        %658 = vmatprep.subr.mxu0 0.0
        %659 = vmatpush1.msra.mxu0 0.0
        %660 = vmatprep.subr.mxu0 0.0
        %661 = vmatpush1.msra.mxu0 0.0
        %662 = vmatprep.subr.mxu0 0.0
        %663 = vmatpush1.msra.mxu0 0.0
        %664 = vmatprep.subr.mxu0 0.0
        %665 = vmatpush1.msra.mxu0 0.0
        %666 = vmatprep.subr.mxu0 0.0
        %667 = vmatpush1.msra.mxu0 0.0
        %668 = vmatprep.subr.mxu0 0.0
        %669 = vmatpush1.msra.mxu0 0.0
        %670 = vmatprep.subr.mxu0 0.0
        %671 = vmatpush1.msra.mxu0 0.0
        %672 = vmatprep.subr.mxu0 0.0
        %673 = vmatpush1.msra.mxu0 0.0
        %674 = vmatprep.subr.mxu0 0.0
        %675 = vmatpush1.msra.mxu0 0.0
        %676 = vmatprep.subr.mxu0 0.0
        %677 = vmatpush1.msra.mxu0 %v645
        %678 = vmatprep.subr.mxu0 0.0
        %679 = vmatpush1.msra.mxu0 %v644
        %680 = vmatprep.subr.mxu0 0.0
        %681 = vmatpush1.msra.mxu0 %v643
        %682 = vmatprep.subr.mxu0 0.0
        %683 = vmatpush1.msra.mxu0 %v642
        %684 = vmatprep.subr.mxu0 0.0
        %685 = vmatpush2.msra.mxu0 0.0
        %686 = vmatprep.subr.mxu0 0.0
        %687 = vmatpush2.msra.mxu0 0.0
        %688 = vmatprep.subr.mxu0 0.0
        %689 = vmatpush2.msra.mxu0 0.0
        %690 = vmatprep.subr.mxu0 0.0
        %691 = vmatpush2.msra.mxu0 0.0
        %692 = vmatprep.subr.mxu0 0.0
        %693 = vmatpush2.msra.mxu0 0.0
        %694 = vmatprep.subr.mxu0 0.0
        %695 = vmatpush2.msra.mxu0 0.0
        %696 = vmatprep.subr.mxu0 0.0
        %697 = vmatpush2.msra.mxu0 0.0
        %698 = vmatprep.subr.mxu0 0.0
        %699 = vmatpush2.msra.mxu0 0.0
        %700 = vmatprep.subr.mxu0 0.0
        %701 = vmatpush2.msra.mxu0 0.0
        %702 = vmatprep.subr.mxu0 0.0
        %703 = vmatpush2.msra.mxu0 0.0
        %704 = vmatprep.subr.mxu0 0.0
        %705 = vmatpush2.msra.mxu0 0.0
        %706 = vmatprep.subr.mxu0 0.0
        %707 = vmatpush2.msra.mxu0 0.0
        %708 = vmatprep.subr.mxu0 0.0
        %709 = vmatpush2.msra.mxu0 0.0
        %710 = vmatprep.subr.mxu0 0.0
        %711 = vmatpush2.msra.mxu0 0.0
        %712 = vmatprep.subr.mxu0 0.0
        %713 = vmatpush2.msra.mxu0 0.0
        %714 = vmatprep.subr.mxu0 0.0
        %715 = vmatpush2.msra.mxu0 0.0
        %716 = vmatprep.mubr.f32.mxu0 0.0
        %717 = vmatmul.mubr.f32.gmra.mxu0 %v647
        %v718 = vpop.f32.mrf.mxu0
        %v719 = vadd.f32 0.0, %v718
        %v720 = vpop.f32.mrf.mxu0
        %721 = vmatprep.mubr.f32.mxu0 0.0
        %722 = vmatmul.mubr.f32.gmra.mxu0 %v650
        %v723 = vpop.f32.mrf.mxu0
        %v724 = vadd.f32 0.0, %v723
        %v725 = vpop.f32.mrf.mxu0
        %726 = vdwg.mxu0
        %v728 = vlaneseq
        %v729 = vshrl.u32 %v728, 7
        %v730 = vsub.s32 0, %v729
        %v731 = vrot.slane %v447, %v730
        %v733 = vadd.f32 %v731, %v719
        %v734 = vadd.f32 %v731, %v724
        %735 = vrot.lane.b32.xlu0 %v448, 96
        %v736 = vpop.permute.xlu0 %735
        %737 = vrot.lane.b32.xlu0 %v449, 96
        %v738 = vpop.permute.xlu0 %737
        %739 = vrot.lane.b32.xlu0 %v364, 96
        %v740 = vpop.permute.xlu0 %739
        %741 = vrot.lane.b32.xlu0 %v370, 96
        %v742 = vpop.permute.xlu0 %741
        %v743 = vsel %vm450, %v736, 0
        %v745 = vsel %vm450, %v738, 0
        %v747 = vsel %vm450, %v740, 0
        %v749 = vsel %vm450, %v742, 0
        %751 = vmatprep.subr.mxu0 0.0
        %752 = vmatpush1.xpose.msra.mxu0 0.0
        %753 = vmatprep.subr.mxu0 0.0
        %754 = vmatpush1.xpose.msra.mxu0 0.0
        %755 = vmatprep.subr.mxu0 0.0
        %756 = vmatpush1.xpose.msra.mxu0 0.0
        %757 = vmatprep.subr.mxu0 0.0
        %758 = vmatpush1.xpose.msra.mxu0 0.0
        %759 = vmatprep.subr.mxu0 0.0
        %760 = vmatpush1.xpose.msra.mxu0 0.0
        %761 = vmatprep.subr.mxu0 0.0
        %762 = vmatpush1.xpose.msra.mxu0 0.0
        %763 = vmatprep.subr.mxu0 0.0
        %764 = vmatpush1.xpose.msra.mxu0 0.0
        %765 = vmatprep.subr.mxu0 0.0
        %766 = vmatpush1.xpose.msra.mxu0 0.0
        %767 = vmatprep.subr.mxu0 0.0
        %768 = vmatpush1.xpose.msra.mxu0 0.0
        %769 = vmatprep.subr.mxu0 0.0
        %770 = vmatpush1.xpose.msra.mxu0 0.0
        %771 = vmatprep.subr.mxu0 0.0
        %772 = vmatpush1.xpose.msra.mxu0 0.0
        %773 = vmatprep.subr.mxu0 0.0
        %774 = vmatpush1.xpose.msra.mxu0 0.0
        %775 = vmatprep.subr.mxu0 0.0
        %776 = vmatpush1.xpose.msra.mxu0 0.0
        %777 = vmatprep.subr.mxu0 0.0
        %778 = vmatpush1.xpose.msra.mxu0 0.0
        %779 = vmatprep.subr.mxu0 0.0
        %780 = vmatpush1.xpose.msra.mxu0 %v749
        %781 = vmatprep.subr.mxu0 0.0
        %782 = vmatpush1.xpose.msra.mxu0 %v747
        %783 = vmatprep.subr.mxu0 0.0
        %784 = vmatpush2.xpose.msra.mxu0 0.0
        %785 = vmatprep.subr.mxu0 0.0
        %786 = vmatpush2.xpose.msra.mxu0 0.0
        %787 = vmatprep.subr.mxu0 0.0
        %788 = vmatpush2.xpose.msra.mxu0 0.0
        %789 = vmatprep.subr.mxu0 0.0
        %790 = vmatpush2.xpose.msra.mxu0 0.0
        %791 = vmatprep.subr.mxu0 0.0
        %792 = vmatpush2.xpose.msra.mxu0 0.0
        %793 = vmatprep.subr.mxu0 0.0
        %794 = vmatpush2.xpose.msra.mxu0 0.0
        %795 = vmatprep.subr.mxu0 0.0
        %796 = vmatpush2.xpose.msra.mxu0 0.0
        %797 = vmatprep.subr.mxu0 0.0
        %798 = vmatpush2.xpose.msra.mxu0 0.0
        %799 = vmatprep.subr.mxu0 0.0
        %800 = vmatpush2.xpose.msra.mxu0 0.0
        %801 = vmatprep.subr.mxu0 0.0
        %802 = vmatpush2.xpose.msra.mxu0 0.0
        %803 = vmatprep.subr.mxu0 0.0
        %804 = vmatpush2.xpose.msra.mxu0 0.0
        %805 = vmatprep.subr.mxu0 0.0
        %806 = vmatpush2.xpose.msra.mxu0 0.0
        %807 = vmatprep.subr.mxu0 0.0
        %808 = vmatpush2.xpose.msra.mxu0 0.0
        %809 = vmatprep.subr.mxu0 0.0
        %810 = vmatpush2.xpose.msra.mxu0 0.0
        %811 = vmatprep.subr.mxu0 0.0
        %812 = vmatpush2.xpose.msra.mxu0 0.0
        %813 = vmatprep.subr.mxu0 0.0
        %814 = vmatpush2.xpose.msra.mxu0 0.0
        %815 = vmatprep.mubr.f32.mxu0 0.0
        %816 = vmatmul.mubr.f32.gmra.mxu0 %v743
        %v817 = vpop.f32.mrf.mxu0
        %v818 = vadd.f32 0.0, %v817
        %v819 = vpop.f32.mrf.mxu0
        %820 = vmatprep.mubr.f32.mxu0 0.0
        %821 = vmatmul.mubr.f32.gmra.mxu0 %v745
        %v822 = vpop.f32.mrf.mxu0
        %v823 = vadd.f32 0.0, %v822
        %v824 = vpop.f32.mrf.mxu0
        %825 = vdwg.mxu0
        %v826 = vsel %vm538, %v818, -inf
        %827 = vmax.xlane.f32.xlu0 %v826
        %v828 = vpop.xlane.xlu0 %827
        %v829 = vsel %vm538, %v823, -inf
        %830 = vmax.xlane.f32.xlu0 %v829
        %v831 = vpop.xlane.xlu0 %830
        %v832 = vsub.f32 %v818, %v828
        %v833 = vsub.f32 %v823, %v831
        %v834 = vmul.f32 %v832, 1.442695
        %v835 = vpow.pop %v834
        %v836 = vmul.f32 %v833, 1.442695
        %v837 = vpow.pop %v836
        %v838 = vsel %vm538, %v835, 0.0
        %839 = vadd.xlane.f32.xlu0 %v838
        %v840 = vpop.xlane.xlu0 %839
        %v841 = vsel %vm538, %v837, 0.0
        %842 = vadd.xlane.f32.xlu0 %v841
        %v843 = vpop.xlane.xlu0 %842
        %v844 = vrcp.pop %v840
        %v845 = vmul.f32 %v835, %v844
        %v846 = vrcp.pop %v843
        %v847 = vmul.f32 %v837, %v846
        %850 = vrot.lane.b32.xlu0 %v439, 96
        %v851 = vpop.permute.xlu0 %850
        %852 = vrot.lane.b32.xlu0 %v444, 96
        %v853 = vpop.permute.xlu0 %852
        %v857 = vsel %vm538, %v845, 0
        %v860 = vsel %vm538, %v847, 0
        %862 = vmatprep.subr.mxu0 0.0
        %863 = vmatpush1.msra.mxu0 0.0
        %864 = vmatprep.subr.mxu0 0.0
        %865 = vmatpush1.msra.mxu0 0.0
        %866 = vmatprep.subr.mxu0 0.0
        %867 = vmatpush1.msra.mxu0 0.0
        %868 = vmatprep.subr.mxu0 0.0
        %869 = vmatpush1.msra.mxu0 0.0
        %870 = vmatprep.subr.mxu0 0.0
        %871 = vmatpush1.msra.mxu0 0.0
        %872 = vmatprep.subr.mxu0 0.0
        %873 = vmatpush1.msra.mxu0 0.0
        %874 = vmatprep.subr.mxu0 0.0
        %875 = vmatpush1.msra.mxu0 0.0
        %876 = vmatprep.subr.mxu0 0.0
        %877 = vmatpush1.msra.mxu0 0.0
        %878 = vmatprep.subr.mxu0 0.0
        %879 = vmatpush1.msra.mxu0 0.0
        %880 = vmatprep.subr.mxu0 0.0
        %881 = vmatpush1.msra.mxu0 0.0
        %882 = vmatprep.subr.mxu0 0.0
        %883 = vmatpush1.msra.mxu0 0.0
        %884 = vmatprep.subr.mxu0 0.0
        %885 = vmatpush1.msra.mxu0 0.0
        %886 = vmatprep.subr.mxu0 0.0
        %887 = vmatpush1.msra.mxu0 0.0
        %888 = vmatprep.subr.mxu0 0.0
        %889 = vmatpush1.msra.mxu0 0.0
        %890 = vmatprep.subr.mxu0 0.0
        %891 = vmatpush1.msra.mxu0 %v853
        %892 = vmatprep.subr.mxu0 0.0
        %893 = vmatpush1.msra.mxu0 %v851
        %894 = vmatprep.subr.mxu0 0.0
        %895 = vmatpush2.msra.mxu0 0.0
        %896 = vmatprep.subr.mxu0 0.0
        %897 = vmatpush2.msra.mxu0 0.0
        %898 = vmatprep.subr.mxu0 0.0
        %899 = vmatpush2.msra.mxu0 0.0
        %900 = vmatprep.subr.mxu0 0.0
        %901 = vmatpush2.msra.mxu0 0.0
        %902 = vmatprep.subr.mxu0 0.0
        %903 = vmatpush2.msra.mxu0 0.0
        %904 = vmatprep.subr.mxu0 0.0
        %905 = vmatpush2.msra.mxu0 0.0
        %906 = vmatprep.subr.mxu0 0.0
        %907 = vmatpush2.msra.mxu0 0.0
        %908 = vmatprep.subr.mxu0 0.0
        %909 = vmatpush2.msra.mxu0 0.0
        %910 = vmatprep.subr.mxu0 0.0
        %911 = vmatpush2.msra.mxu0 0.0
        %912 = vmatprep.subr.mxu0 0.0
        %913 = vmatpush2.msra.mxu0 0.0
        %914 = vmatprep.subr.mxu0 0.0
        %915 = vmatpush2.msra.mxu0 0.0
        %916 = vmatprep.subr.mxu0 0.0
        %917 = vmatpush2.msra.mxu0 0.0
        %918 = vmatprep.subr.mxu0 0.0
        %919 = vmatpush2.msra.mxu0 0.0
        %920 = vmatprep.subr.mxu0 0.0
        %921 = vmatpush2.msra.mxu0 0.0
        %922 = vmatprep.subr.mxu0 0.0
        %923 = vmatpush2.msra.mxu0 0.0
        %924 = vmatprep.subr.mxu0 0.0
        %925 = vmatpush2.msra.mxu0 0.0
        %926 = vmatprep.mubr.f32.mxu0 0.0
        %927 = vmatmul.mubr.f32.gmra.mxu0 %v857
        %v928 = vpop.f32.mrf.mxu0
        %v929 = vadd.f32 0.0, %v928
        %v930 = vpop.f32.mrf.mxu0
        %931 = vmatprep.mubr.f32.mxu0 0.0
        %932 = vmatmul.mubr.f32.gmra.mxu0 %v860
        %v933 = vpop.f32.mrf.mxu0
        %v934 = vadd.f32 0.0, %v933
        %v935 = vpop.f32.mrf.mxu0
        %936 = vdwg.mxu0
        %v937 = vld [vmem:[#allocation7 + $0x20] sm:$0xff]
        %v938 = vld [vmem:[#allocation7 + $0x28] sm:$0xff]
        %v939 = vld [vmem:[#allocation7 + $0x30] sm:$0xff]
        %v940 = vld [vmem:[#allocation7 + $0x38] sm:$0xff]
        %v942 = vsel %vm450, %v929, 0
        %v945 = vsel %vm450, %v934, 0
        %947 = vmatprep.subr.mxu0 0.0
        %948 = vmatpush1.msra.mxu0 0.0
        %949 = vmatprep.subr.mxu0 0.0
        %950 = vmatpush1.msra.mxu0 0.0
        %951 = vmatprep.subr.mxu0 0.0
        %952 = vmatpush1.msra.mxu0 0.0
        %953 = vmatprep.subr.mxu0 0.0
        %954 = vmatpush1.msra.mxu0 0.0
        %955 = vmatprep.subr.mxu0 0.0
        %956 = vmatpush1.msra.mxu0 0.0
        %957 = vmatprep.subr.mxu0 0.0
        %958 = vmatpush1.msra.mxu0 0.0
        %959 = vmatprep.subr.mxu0 0.0
        %960 = vmatpush1.msra.mxu0 0.0
        %961 = vmatprep.subr.mxu0 0.0
        %962 = vmatpush1.msra.mxu0 0.0
        %963 = vmatprep.subr.mxu0 0.0
        %964 = vmatpush1.msra.mxu0 0.0
        %965 = vmatprep.subr.mxu0 0.0
        %966 = vmatpush1.msra.mxu0 0.0
        %967 = vmatprep.subr.mxu0 0.0
        %968 = vmatpush1.msra.mxu0 0.0
        %969 = vmatprep.subr.mxu0 0.0
        %970 = vmatpush1.msra.mxu0 0.0
        %971 = vmatprep.subr.mxu0 0.0
        %972 = vmatpush1.msra.mxu0 %v940
        %973 = vmatprep.subr.mxu0 0.0
        %974 = vmatpush1.msra.mxu0 %v939
        %975 = vmatprep.subr.mxu0 0.0
        %976 = vmatpush1.msra.mxu0 %v938
        %977 = vmatprep.subr.mxu0 0.0
        %978 = vmatpush1.msra.mxu0 %v937
        %979 = vmatprep.subr.mxu0 0.0
        %980 = vmatpush2.msra.mxu0 0.0
        %981 = vmatprep.subr.mxu0 0.0
        %982 = vmatpush2.msra.mxu0 0.0
        %983 = vmatprep.subr.mxu0 0.0
        %984 = vmatpush2.msra.mxu0 0.0
        %985 = vmatprep.subr.mxu0 0.0
        %986 = vmatpush2.msra.mxu0 0.0
        %987 = vmatprep.subr.mxu0 0.0
        %988 = vmatpush2.msra.mxu0 0.0
        %989 = vmatprep.subr.mxu0 0.0
        %990 = vmatpush2.msra.mxu0 0.0
        %991 = vmatprep.subr.mxu0 0.0
        %992 = vmatpush2.msra.mxu0 0.0
        %993 = vmatprep.subr.mxu0 0.0
        %994 = vmatpush2.msra.mxu0 0.0
        %995 = vmatprep.subr.mxu0 0.0
        %996 = vmatpush2.msra.mxu0 0.0
        %997 = vmatprep.subr.mxu0 0.0
        %998 = vmatpush2.msra.mxu0 0.0
        %999 = vmatprep.subr.mxu0 0.0
        %1000 = vmatpush2.msra.mxu0 0.0
        %1001 = vmatprep.subr.mxu0 0.0
        %1002 = vmatpush2.msra.mxu0 0.0
        %1003 = vmatprep.subr.mxu0 0.0
        %1004 = vmatpush2.msra.mxu0 0.0
        %1005 = vmatprep.subr.mxu0 0.0
        %1006 = vmatpush2.msra.mxu0 0.0
        %1007 = vmatprep.subr.mxu0 0.0
        %1008 = vmatpush2.msra.mxu0 0.0
        %1009 = vmatprep.subr.mxu0 0.0
        %1010 = vmatpush2.msra.mxu0 0.0
        %1011 = vmatprep.mubr.f32.mxu0 0.0
        %1012 = vmatmul.mubr.f32.gmra.mxu0 %v942
        %v1013 = vpop.f32.mrf.mxu0
        %v1014 = vadd.f32 0.0, %v1013
        %v1015 = vpop.f32.mrf.mxu0
        %1016 = vmatprep.mubr.f32.mxu0 0.0
        %1017 = vmatmul.mubr.f32.gmra.mxu0 %v945
        %v1018 = vpop.f32.mrf.mxu0
        %v1019 = vadd.f32 0.0, %v1018
        %v1020 = vpop.f32.mrf.mxu0
        %1021 = vdwg.mxu0
        %v1022 = vadd.f32 %v733, %v1014
        %v1023 = vadd.f32 %v734, %v1019
        %1024 = vrot.lane.b32.xlu0 %v448, 64
        %v1025 = vpop.permute.xlu0 %1024
        %1026 = vrot.lane.b32.xlu0 %v449, 64
        %v1027 = vpop.permute.xlu0 %1026
        %1028 = vrot.lane.b32.xlu0 %v364, 64
        %v1029 = vpop.permute.xlu0 %1028
        %1030 = vrot.lane.b32.xlu0 %v370, 64
        %v1031 = vpop.permute.xlu0 %1030
        %v1032 = vsel %vm450, %v1025, 0
        %v1034 = vsel %vm450, %v1027, 0
        %v1036 = vsel %vm450, %v1029, 0
        %v1038 = vsel %vm450, %v1031, 0
        %1040 = vmatprep.subr.mxu0 0.0
        %1041 = vmatpush1.xpose.msra.mxu0 0.0
        %1042 = vmatprep.subr.mxu0 0.0
        %1043 = vmatpush1.xpose.msra.mxu0 0.0
        %1044 = vmatprep.subr.mxu0 0.0
        %1045 = vmatpush1.xpose.msra.mxu0 0.0
        %1046 = vmatprep.subr.mxu0 0.0
        %1047 = vmatpush1.xpose.msra.mxu0 0.0
        %1048 = vmatprep.subr.mxu0 0.0
        %1049 = vmatpush1.xpose.msra.mxu0 0.0
        %1050 = vmatprep.subr.mxu0 0.0
        %1051 = vmatpush1.xpose.msra.mxu0 0.0
        %1052 = vmatprep.subr.mxu0 0.0
        %1053 = vmatpush1.xpose.msra.mxu0 0.0
        %1054 = vmatprep.subr.mxu0 0.0
        %1055 = vmatpush1.xpose.msra.mxu0 0.0
        %1056 = vmatprep.subr.mxu0 0.0
        %1057 = vmatpush1.xpose.msra.mxu0 0.0
        %1058 = vmatprep.subr.mxu0 0.0
        %1059 = vmatpush1.xpose.msra.mxu0 0.0
        %1060 = vmatprep.subr.mxu0 0.0
        %1061 = vmatpush1.xpose.msra.mxu0 0.0
        %1062 = vmatprep.subr.mxu0 0.0
        %1063 = vmatpush1.xpose.msra.mxu0 0.0
        %1064 = vmatprep.subr.mxu0 0.0
        %1065 = vmatpush1.xpose.msra.mxu0 0.0
        %1066 = vmatprep.subr.mxu0 0.0
        %1067 = vmatpush1.xpose.msra.mxu0 0.0
        %1068 = vmatprep.subr.mxu0 0.0
        %1069 = vmatpush1.xpose.msra.mxu0 %v1038
        %1070 = vmatprep.subr.mxu0 0.0
        %1071 = vmatpush1.xpose.msra.mxu0 %v1036
        %1072 = vmatprep.subr.mxu0 0.0
        %1073 = vmatpush2.xpose.msra.mxu0 0.0
        %1074 = vmatprep.subr.mxu0 0.0
        %1075 = vmatpush2.xpose.msra.mxu0 0.0
        %1076 = vmatprep.subr.mxu0 0.0
        %1077 = vmatpush2.xpose.msra.mxu0 0.0
        %1078 = vmatprep.subr.mxu0 0.0
        %1079 = vmatpush2.xpose.msra.mxu0 0.0
        %1080 = vmatprep.subr.mxu0 0.0
        %1081 = vmatpush2.xpose.msra.mxu0 0.0
        %1082 = vmatprep.subr.mxu0 0.0
        %1083 = vmatpush2.xpose.msra.mxu0 0.0
        %1084 = vmatprep.subr.mxu0 0.0
        %1085 = vmatpush2.xpose.msra.mxu0 0.0
        %1086 = vmatprep.subr.mxu0 0.0
        %1087 = vmatpush2.xpose.msra.mxu0 0.0
        %1088 = vmatprep.subr.mxu0 0.0
        %1089 = vmatpush2.xpose.msra.mxu0 0.0
        %1090 = vmatprep.subr.mxu0 0.0
        %1091 = vmatpush2.xpose.msra.mxu0 0.0
        %1092 = vmatprep.subr.mxu0 0.0
        %1093 = vmatpush2.xpose.msra.mxu0 0.0
        %1094 = vmatprep.subr.mxu0 0.0
        %1095 = vmatpush2.xpose.msra.mxu0 0.0
        %1096 = vmatprep.subr.mxu0 0.0
        %1097 = vmatpush2.xpose.msra.mxu0 0.0
        %1098 = vmatprep.subr.mxu0 0.0
        %1099 = vmatpush2.xpose.msra.mxu0 0.0
        %1100 = vmatprep.subr.mxu0 0.0
        %1101 = vmatpush2.xpose.msra.mxu0 0.0
        %1102 = vmatprep.subr.mxu0 0.0
        %1103 = vmatpush2.xpose.msra.mxu0 0.0
        %1104 = vmatprep.mubr.f32.mxu0 0.0
        %1105 = vmatmul.mubr.f32.gmra.mxu0 %v1032
        %v1106 = vpop.f32.mrf.mxu0
        %v1107 = vadd.f32 0.0, %v1106
        %v1108 = vpop.f32.mrf.mxu0
        %1109 = vmatprep.mubr.f32.mxu0 0.0
        %1110 = vmatmul.mubr.f32.gmra.mxu0 %v1034
        %v1111 = vpop.f32.mrf.mxu0
        %v1112 = vadd.f32 0.0, %v1111
        %v1113 = vpop.f32.mrf.mxu0
        %1114 = vdwg.mxu0
        %v1115 = vsel %vm538, %v1107, -inf
        %1116 = vmax.xlane.f32.xlu0 %v1115
        %v1117 = vpop.xlane.xlu0 %1116
        %v1118 = vsel %vm538, %v1112, -inf
        %1119 = vmax.xlane.f32.xlu0 %v1118
        %v1120 = vpop.xlane.xlu0 %1119
        %v1121 = vsub.f32 %v1107, %v1117
        %v1122 = vsub.f32 %v1112, %v1120
        %v1123 = vmul.f32 %v1121, 1.442695
        %v1124 = vpow.pop %v1123
        %v1125 = vmul.f32 %v1122, 1.442695
        %v1126 = vpow.pop %v1125
        %v1127 = vsel %vm538, %v1124, 0.0
        %1128 = vadd.xlane.f32.xlu0 %v1127
        %v1129 = vpop.xlane.xlu0 %1128
        %v1130 = vsel %vm538, %v1126, 0.0
        %1131 = vadd.xlane.f32.xlu0 %v1130
        %v1132 = vpop.xlane.xlu0 %1131
        %v1133 = vrcp.pop %v1129
        %v1134 = vmul.f32 %v1124, %v1133
        %v1135 = vrcp.pop %v1132
        %v1136 = vmul.f32 %v1126, %v1135
        %1137 = vrot.lane.b32.xlu0 %v439, 64
        %v1138 = vpop.permute.xlu0 %1137
        %1139 = vrot.lane.b32.xlu0 %v444, 64
        %v1140 = vpop.permute.xlu0 %1139
        %v1144 = vsel %vm538, %v1134, 0
        %v1147 = vsel %vm538, %v1136, 0
        %1149 = vmatprep.subr.mxu0 0.0
        %1150 = vmatpush1.msra.mxu0 0.0
        %1151 = vmatprep.subr.mxu0 0.0
        %1152 = vmatpush1.msra.mxu0 0.0
        %1153 = vmatprep.subr.mxu0 0.0
        %1154 = vmatpush1.msra.mxu0 0.0
        %1155 = vmatprep.subr.mxu0 0.0
        %1156 = vmatpush1.msra.mxu0 0.0
        %1157 = vmatprep.subr.mxu0 0.0
        %1158 = vmatpush1.msra.mxu0 0.0
        %1159 = vmatprep.subr.mxu0 0.0
        %1160 = vmatpush1.msra.mxu0 0.0
        %1161 = vmatprep.subr.mxu0 0.0
        %1162 = vmatpush1.msra.mxu0 0.0
        %1163 = vmatprep.subr.mxu0 0.0
        %1164 = vmatpush1.msra.mxu0 0.0
        %1165 = vmatprep.subr.mxu0 0.0
        %1166 = vmatpush1.msra.mxu0 0.0
        %1167 = vmatprep.subr.mxu0 0.0
        %1168 = vmatpush1.msra.mxu0 0.0
        %1169 = vmatprep.subr.mxu0 0.0
        %1170 = vmatpush1.msra.mxu0 0.0
        %1171 = vmatprep.subr.mxu0 0.0
        %1172 = vmatpush1.msra.mxu0 0.0
        %1173 = vmatprep.subr.mxu0 0.0
        %1174 = vmatpush1.msra.mxu0 0.0
        %1175 = vmatprep.subr.mxu0 0.0
        %1176 = vmatpush1.msra.mxu0 0.0
        %1177 = vmatprep.subr.mxu0 0.0
        %1178 = vmatpush1.msra.mxu0 %v1140
        %1179 = vmatprep.subr.mxu0 0.0
        %1180 = vmatpush1.msra.mxu0 %v1138
        %1181 = vmatprep.subr.mxu0 0.0
        %1182 = vmatpush2.msra.mxu0 0.0
        %1183 = vmatprep.subr.mxu0 0.0
        %1184 = vmatpush2.msra.mxu0 0.0
        %1185 = vmatprep.subr.mxu0 0.0
        %1186 = vmatpush2.msra.mxu0 0.0
        %1187 = vmatprep.subr.mxu0 0.0
        %1188 = vmatpush2.msra.mxu0 0.0
        %1189 = vmatprep.subr.mxu0 0.0
        %1190 = vmatpush2.msra.mxu0 0.0
        %1191 = vmatprep.subr.mxu0 0.0
        %1192 = vmatpush2.msra.mxu0 0.0
        %1193 = vmatprep.subr.mxu0 0.0
        %1194 = vmatpush2.msra.mxu0 0.0
        %1195 = vmatprep.subr.mxu0 0.0
        %1196 = vmatpush2.msra.mxu0 0.0
        %1197 = vmatprep.subr.mxu0 0.0
        %1198 = vmatpush2.msra.mxu0 0.0
        %1199 = vmatprep.subr.mxu0 0.0
        %1200 = vmatpush2.msra.mxu0 0.0
        %1201 = vmatprep.subr.mxu0 0.0
        %1202 = vmatpush2.msra.mxu0 0.0
        %1203 = vmatprep.subr.mxu0 0.0
        %1204 = vmatpush2.msra.mxu0 0.0
        %1205 = vmatprep.subr.mxu0 0.0
        %1206 = vmatpush2.msra.mxu0 0.0
        %1207 = vmatprep.subr.mxu0 0.0
        %1208 = vmatpush2.msra.mxu0 0.0
        %1209 = vmatprep.subr.mxu0 0.0
        %1210 = vmatpush2.msra.mxu0 0.0
        %1211 = vmatprep.subr.mxu0 0.0
        %1212 = vmatpush2.msra.mxu0 0.0
        %1213 = vmatprep.mubr.f32.mxu0 0.0
        %1214 = vmatmul.mubr.f32.gmra.mxu0 %v1144
        %v1215 = vpop.f32.mrf.mxu0
        %v1216 = vadd.f32 0.0, %v1215
        %v1217 = vpop.f32.mrf.mxu0
        %1218 = vmatprep.mubr.f32.mxu0 0.0
        %1219 = vmatmul.mubr.f32.gmra.mxu0 %v1147
        %v1220 = vpop.f32.mrf.mxu0
        %v1221 = vadd.f32 0.0, %v1220
        %v1222 = vpop.f32.mrf.mxu0
        %1223 = vdwg.mxu0
        %v1224 = vld [vmem:[#allocation7 + $0x40] sm:$0xff]
        %v1225 = vld [vmem:[#allocation7 + $0x48] sm:$0xff]
        %v1226 = vld [vmem:[#allocation7 + $0x50] sm:$0xff]
        %v1227 = vld [vmem:[#allocation7 + $0x58] sm:$0xff]
        %v1229 = vsel %vm450, %v1216, 0
        %v1232 = vsel %vm450, %v1221, 0
        %1234 = vmatprep.subr.mxu0 0.0
        %1235 = vmatpush1.msra.mxu0 0.0
        %1236 = vmatprep.subr.mxu0 0.0
        %1237 = vmatpush1.msra.mxu0 0.0
        %1238 = vmatprep.subr.mxu0 0.0
        %1239 = vmatpush1.msra.mxu0 0.0
        %1240 = vmatprep.subr.mxu0 0.0
        %1241 = vmatpush1.msra.mxu0 0.0
        %1242 = vmatprep.subr.mxu0 0.0
        %1243 = vmatpush1.msra.mxu0 0.0
        %1244 = vmatprep.subr.mxu0 0.0
        %1245 = vmatpush1.msra.mxu0 0.0
        %1246 = vmatprep.subr.mxu0 0.0
        %1247 = vmatpush1.msra.mxu0 0.0
        %1248 = vmatprep.subr.mxu0 0.0
        %1249 = vmatpush1.msra.mxu0 0.0
        %1250 = vmatprep.subr.mxu0 0.0
        %1251 = vmatpush1.msra.mxu0 0.0
        %1252 = vmatprep.subr.mxu0 0.0
        %1253 = vmatpush1.msra.mxu0 0.0
        %1254 = vmatprep.subr.mxu0 0.0
        %1255 = vmatpush1.msra.mxu0 0.0
        %1256 = vmatprep.subr.mxu0 0.0
        %1257 = vmatpush1.msra.mxu0 0.0
        %1258 = vmatprep.subr.mxu0 0.0
        %1259 = vmatpush1.msra.mxu0 %v1227
        %1260 = vmatprep.subr.mxu0 0.0
        %1261 = vmatpush1.msra.mxu0 %v1226
        %1262 = vmatprep.subr.mxu0 0.0
        %1263 = vmatpush1.msra.mxu0 %v1225
        %1264 = vmatprep.subr.mxu0 0.0
        %1265 = vmatpush1.msra.mxu0 %v1224
        %1266 = vmatprep.subr.mxu0 0.0
        %1267 = vmatpush2.msra.mxu0 0.0
        %1268 = vmatprep.subr.mxu0 0.0
        %1269 = vmatpush2.msra.mxu0 0.0
        %1270 = vmatprep.subr.mxu0 0.0
        %1271 = vmatpush2.msra.mxu0 0.0
        %1272 = vmatprep.subr.mxu0 0.0
        %1273 = vmatpush2.msra.mxu0 0.0
        %1274 = vmatprep.subr.mxu0 0.0
        %1275 = vmatpush2.msra.mxu0 0.0
        %1276 = vmatprep.subr.mxu0 0.0
        %1277 = vmatpush2.msra.mxu0 0.0
        %1278 = vmatprep.subr.mxu0 0.0
        %1279 = vmatpush2.msra.mxu0 0.0
        %1280 = vmatprep.subr.mxu0 0.0
        %1281 = vmatpush2.msra.mxu0 0.0
        %1282 = vmatprep.subr.mxu0 0.0
        %1283 = vmatpush2.msra.mxu0 0.0
        %1284 = vmatprep.subr.mxu0 0.0
        %1285 = vmatpush2.msra.mxu0 0.0
        %1286 = vmatprep.subr.mxu0 0.0
        %1287 = vmatpush2.msra.mxu0 0.0
        %1288 = vmatprep.subr.mxu0 0.0
        %1289 = vmatpush2.msra.mxu0 0.0
        %1290 = vmatprep.subr.mxu0 0.0
        %1291 = vmatpush2.msra.mxu0 0.0
        %1292 = vmatprep.subr.mxu0 0.0
        %1293 = vmatpush2.msra.mxu0 0.0
        %1294 = vmatprep.subr.mxu0 0.0
        %1295 = vmatpush2.msra.mxu0 0.0
        %1296 = vmatprep.subr.mxu0 0.0
        %1297 = vmatpush2.msra.mxu0 0.0
        %1298 = vmatprep.mubr.f32.mxu0 0.0
        %1299 = vmatmul.mubr.f32.gmra.mxu0 %v1229
        %v1300 = vpop.f32.mrf.mxu0
        %v1301 = vadd.f32 0.0, %v1300
        %v1302 = vpop.f32.mrf.mxu0
        %1303 = vmatprep.mubr.f32.mxu0 0.0
        %1304 = vmatmul.mubr.f32.gmra.mxu0 %v1232
        %v1305 = vpop.f32.mrf.mxu0
        %v1306 = vadd.f32 0.0, %v1305
        %v1307 = vpop.f32.mrf.mxu0
        %1308 = vdwg.mxu0
        %v1309 = vadd.f32 %v1022, %v1301
        %v1310 = vadd.f32 %v1023, %v1306
        %1311 = vrot.lane.b32.xlu0 %v448, 32
        %v1312 = vpop.permute.xlu0 %1311
        %1313 = vrot.lane.b32.xlu0 %v449, 32
        %v1314 = vpop.permute.xlu0 %1313
        %1315 = vrot.lane.b32.xlu0 %v364, 32
        %v1316 = vpop.permute.xlu0 %1315
        %1317 = vrot.lane.b32.xlu0 %v370, 32
        %v1318 = vpop.permute.xlu0 %1317
        %v1319 = vsel %vm450, %v1312, 0
        %v1321 = vsel %vm450, %v1314, 0
        %v1323 = vsel %vm450, %v1316, 0
        %v1325 = vsel %vm450, %v1318, 0
        %1327 = vmatprep.subr.mxu0 0.0
        %1328 = vmatpush1.xpose.msra.mxu0 0.0
        %1329 = vmatprep.subr.mxu0 0.0
        %1330 = vmatpush1.xpose.msra.mxu0 0.0
        %1331 = vmatprep.subr.mxu0 0.0
        %1332 = vmatpush1.xpose.msra.mxu0 0.0
        %1333 = vmatprep.subr.mxu0 0.0
        %1334 = vmatpush1.xpose.msra.mxu0 0.0
        %1335 = vmatprep.subr.mxu0 0.0
        %1336 = vmatpush1.xpose.msra.mxu0 0.0
        %1337 = vmatprep.subr.mxu0 0.0
        %1338 = vmatpush1.xpose.msra.mxu0 0.0
        %1339 = vmatprep.subr.mxu0 0.0
        %1340 = vmatpush1.xpose.msra.mxu0 0.0
        %1341 = vmatprep.subr.mxu0 0.0
        %1342 = vmatpush1.xpose.msra.mxu0 0.0
        %1343 = vmatprep.subr.mxu0 0.0
        %1344 = vmatpush1.xpose.msra.mxu0 0.0
        %1345 = vmatprep.subr.mxu0 0.0
        %1346 = vmatpush1.xpose.msra.mxu0 0.0
        %1347 = vmatprep.subr.mxu0 0.0
        %1348 = vmatpush1.xpose.msra.mxu0 0.0
        %1349 = vmatprep.subr.mxu0 0.0
        %1350 = vmatpush1.xpose.msra.mxu0 0.0
        %1351 = vmatprep.subr.mxu0 0.0
        %1352 = vmatpush1.xpose.msra.mxu0 0.0
        %1353 = vmatprep.subr.mxu0 0.0
        %1354 = vmatpush1.xpose.msra.mxu0 0.0
        %1355 = vmatprep.subr.mxu0 0.0
        %1356 = vmatpush1.xpose.msra.mxu0 %v1325
        %1357 = vmatprep.subr.mxu0 0.0
        %1358 = vmatpush1.xpose.msra.mxu0 %v1323
        %1359 = vmatprep.subr.mxu0 0.0
        %1360 = vmatpush2.xpose.msra.mxu0 0.0
        %1361 = vmatprep.subr.mxu0 0.0
        %1362 = vmatpush2.xpose.msra.mxu0 0.0
        %1363 = vmatprep.subr.mxu0 0.0
        %1364 = vmatpush2.xpose.msra.mxu0 0.0
        %1365 = vmatprep.subr.mxu0 0.0
        %1366 = vmatpush2.xpose.msra.mxu0 0.0
        %1367 = vmatprep.subr.mxu0 0.0
        %1368 = vmatpush2.xpose.msra.mxu0 0.0
        %1369 = vmatprep.subr.mxu0 0.0
        %1370 = vmatpush2.xpose.msra.mxu0 0.0
        %1371 = vmatprep.subr.mxu0 0.0
        %1372 = vmatpush2.xpose.msra.mxu0 0.0
        %1373 = vmatprep.subr.mxu0 0.0
        %1374 = vmatpush2.xpose.msra.mxu0 0.0
        %1375 = vmatprep.subr.mxu0 0.0
        %1376 = vmatpush2.xpose.msra.mxu0 0.0
        %1377 = vmatprep.subr.mxu0 0.0
        %1378 = vmatpush2.xpose.msra.mxu0 0.0
        %1379 = vmatprep.subr.mxu0 0.0
        %1380 = vmatpush2.xpose.msra.mxu0 0.0
        %1381 = vmatprep.subr.mxu0 0.0
        %1382 = vmatpush2.xpose.msra.mxu0 0.0
        %1383 = vmatprep.subr.mxu0 0.0
        %1384 = vmatpush2.xpose.msra.mxu0 0.0
        %1385 = vmatprep.subr.mxu0 0.0
        %1386 = vmatpush2.xpose.msra.mxu0 0.0
        %1387 = vmatprep.subr.mxu0 0.0
        %1388 = vmatpush2.xpose.msra.mxu0 0.0
        %1389 = vmatprep.subr.mxu0 0.0
        %1390 = vmatpush2.xpose.msra.mxu0 0.0
        %1391 = vmatprep.mubr.f32.mxu0 0.0
        %1392 = vmatmul.mubr.f32.gmra.mxu0 %v1319
        %v1393 = vpop.f32.mrf.mxu0
        %v1394 = vadd.f32 0.0, %v1393
        %v1395 = vpop.f32.mrf.mxu0
        %1396 = vmatprep.mubr.f32.mxu0 0.0
        %1397 = vmatmul.mubr.f32.gmra.mxu0 %v1321
        %v1398 = vpop.f32.mrf.mxu0
        %v1399 = vadd.f32 0.0, %v1398
        %v1400 = vpop.f32.mrf.mxu0
        %1401 = vdwg.mxu0
        %v1402 = vsel %vm538, %v1394, -inf
        %1403 = vmax.xlane.f32.xlu0 %v1402
        %v1404 = vpop.xlane.xlu0 %1403
        %v1405 = vsel %vm538, %v1399, -inf
        %1406 = vmax.xlane.f32.xlu0 %v1405
        %v1407 = vpop.xlane.xlu0 %1406
        %v1408 = vsub.f32 %v1394, %v1404
        %v1409 = vsub.f32 %v1399, %v1407
        %v1410 = vmul.f32 %v1408, 1.442695
        %v1411 = vpow.pop %v1410
        %v1412 = vmul.f32 %v1409, 1.442695
        %v1413 = vpow.pop %v1412
        %v1414 = vsel %vm538, %v1411, 0.0
        %1415 = vadd.xlane.f32.xlu0 %v1414
        %v1416 = vpop.xlane.xlu0 %1415
        %v1417 = vsel %vm538, %v1413, 0.0
        %1418 = vadd.xlane.f32.xlu0 %v1417
        %v1419 = vpop.xlane.xlu0 %1418
        %v1420 = vrcp.pop %v1416
        %v1421 = vmul.f32 %v1411, %v1420
        %v1422 = vrcp.pop %v1419
        %v1423 = vmul.f32 %v1413, %v1422
        %1424 = vrot.lane.b32.xlu0 %v439, 32
        %v1425 = vpop.permute.xlu0 %1424
        %1426 = vrot.lane.b32.xlu0 %v444, 32
        %v1427 = vpop.permute.xlu0 %1426
        %v1431 = vsel %vm538, %v1421, 0
        %v1434 = vsel %vm538, %v1423, 0
        %1436 = vmatprep.subr.mxu0 0.0
        %1437 = vmatpush1.msra.mxu0 0.0
        %1438 = vmatprep.subr.mxu0 0.0
        %1439 = vmatpush1.msra.mxu0 0.0
        %1440 = vmatprep.subr.mxu0 0.0
        %1441 = vmatpush1.msra.mxu0 0.0
        %1442 = vmatprep.subr.mxu0 0.0
        %1443 = vmatpush1.msra.mxu0 0.0
        %1444 = vmatprep.subr.mxu0 0.0
        %1445 = vmatpush1.msra.mxu0 0.0
        %1446 = vmatprep.subr.mxu0 0.0
        %1447 = vmatpush1.msra.mxu0 0.0
        %1448 = vmatprep.subr.mxu0 0.0
        %1449 = vmatpush1.msra.mxu0 0.0
        %1450 = vmatprep.subr.mxu0 0.0
        %1451 = vmatpush1.msra.mxu0 0.0
        %1452 = vmatprep.subr.mxu0 0.0
        %1453 = vmatpush1.msra.mxu0 0.0
        %1454 = vmatprep.subr.mxu0 0.0
        %1455 = vmatpush1.msra.mxu0 0.0
        %1456 = vmatprep.subr.mxu0 0.0
        %1457 = vmatpush1.msra.mxu0 0.0
        %1458 = vmatprep.subr.mxu0 0.0
        %1459 = vmatpush1.msra.mxu0 0.0
        %1460 = vmatprep.subr.mxu0 0.0
        %1461 = vmatpush1.msra.mxu0 0.0
        %1462 = vmatprep.subr.mxu0 0.0
        %1463 = vmatpush1.msra.mxu0 0.0
        %1464 = vmatprep.subr.mxu0 0.0
        %1465 = vmatpush1.msra.mxu0 %v1427
        %1466 = vmatprep.subr.mxu0 0.0
        %1467 = vmatpush1.msra.mxu0 %v1425
        %1468 = vmatprep.subr.mxu0 0.0
        %1469 = vmatpush2.msra.mxu0 0.0
        %1470 = vmatprep.subr.mxu0 0.0
        %1471 = vmatpush2.msra.mxu0 0.0
        %1472 = vmatprep.subr.mxu0 0.0
        %1473 = vmatpush2.msra.mxu0 0.0
        %1474 = vmatprep.subr.mxu0 0.0
        %1475 = vmatpush2.msra.mxu0 0.0
        %1476 = vmatprep.subr.mxu0 0.0
        %1477 = vmatpush2.msra.mxu0 0.0
        %1478 = vmatprep.subr.mxu0 0.0
        %1479 = vmatpush2.msra.mxu0 0.0
        %1480 = vmatprep.subr.mxu0 0.0
        %1481 = vmatpush2.msra.mxu0 0.0
        %1482 = vmatprep.subr.mxu0 0.0
        %1483 = vmatpush2.msra.mxu0 0.0
        %1484 = vmatprep.subr.mxu0 0.0
        %1485 = vmatpush2.msra.mxu0 0.0
        %1486 = vmatprep.subr.mxu0 0.0
        %1487 = vmatpush2.msra.mxu0 0.0
        %1488 = vmatprep.subr.mxu0 0.0
        %1489 = vmatpush2.msra.mxu0 0.0
        %1490 = vmatprep.subr.mxu0 0.0
        %1491 = vmatpush2.msra.mxu0 0.0
        %1492 = vmatprep.subr.mxu0 0.0
        %1493 = vmatpush2.msra.mxu0 0.0
        %1494 = vmatprep.subr.mxu0 0.0
        %1495 = vmatpush2.msra.mxu0 0.0
        %1496 = vmatprep.subr.mxu0 0.0
        %1497 = vmatpush2.msra.mxu0 0.0
        %1498 = vmatprep.subr.mxu0 0.0
        %1499 = vmatpush2.msra.mxu0 0.0
        %1500 = vmatprep.mubr.f32.mxu0 0.0
        %1501 = vmatmul.mubr.f32.gmra.mxu0 %v1431
        %v1502 = vpop.f32.mrf.mxu0
        %v1503 = vadd.f32 0.0, %v1502
        %v1504 = vpop.f32.mrf.mxu0
        %1505 = vmatprep.mubr.f32.mxu0 0.0
        %1506 = vmatmul.mubr.f32.gmra.mxu0 %v1434
        %v1507 = vpop.f32.mrf.mxu0
        %v1508 = vadd.f32 0.0, %v1507
        %v1509 = vpop.f32.mrf.mxu0
        %1510 = vdwg.mxu0
        %v1511 = vld [vmem:[#allocation7 + $0x60] sm:$0xff]
        %v1512 = vld [vmem:[#allocation7 + $0x68] sm:$0xff]
        %v1513 = vld [vmem:[#allocation7 + $0x70] sm:$0xff]
        %v1514 = vld [vmem:[#allocation7 + $0x78] sm:$0xff]
        %v1516 = vsel %vm450, %v1503, 0
        %v1519 = vsel %vm450, %v1508, 0
        %1521 = vmatprep.subr.mxu0 0.0
        %1522 = vmatpush1.msra.mxu0 0.0
        %1523 = vmatprep.subr.mxu0 0.0
        %1524 = vmatpush1.msra.mxu0 0.0
        %1525 = vmatprep.subr.mxu0 0.0
        %1526 = vmatpush1.msra.mxu0 0.0
        %1527 = vmatprep.subr.mxu0 0.0
        %1528 = vmatpush1.msra.mxu0 0.0
        %1529 = vmatprep.subr.mxu0 0.0
        %1530 = vmatpush1.msra.mxu0 0.0
        %1531 = vmatprep.subr.mxu0 0.0
        %1532 = vmatpush1.msra.mxu0 0.0
        %1533 = vmatprep.subr.mxu0 0.0
        %1534 = vmatpush1.msra.mxu0 0.0
        %1535 = vmatprep.subr.mxu0 0.0
        %1536 = vmatpush1.msra.mxu0 0.0
        %1537 = vmatprep.subr.mxu0 0.0
        %1538 = vmatpush1.msra.mxu0 0.0
        %1539 = vmatprep.subr.mxu0 0.0
        %1540 = vmatpush1.msra.mxu0 0.0
        %1541 = vmatprep.subr.mxu0 0.0
        %1542 = vmatpush1.msra.mxu0 0.0
        %1543 = vmatprep.subr.mxu0 0.0
        %1544 = vmatpush1.msra.mxu0 0.0
        %1545 = vmatprep.subr.mxu0 0.0
        %1546 = vmatpush1.msra.mxu0 %v1514
        %1547 = vmatprep.subr.mxu0 0.0
        %1548 = vmatpush1.msra.mxu0 %v1513
        %1549 = vmatprep.subr.mxu0 0.0
        %1550 = vmatpush1.msra.mxu0 %v1512
        %1551 = vmatprep.subr.mxu0 0.0
        %1552 = vmatpush1.msra.mxu0 %v1511
        %1553 = vmatprep.subr.mxu0 0.0
        %1554 = vmatpush2.msra.mxu0 0.0
        %1555 = vmatprep.subr.mxu0 0.0
        %1556 = vmatpush2.msra.mxu0 0.0
        %1557 = vmatprep.subr.mxu0 0.0
        %1558 = vmatpush2.msra.mxu0 0.0
        %1559 = vmatprep.subr.mxu0 0.0
        %1560 = vmatpush2.msra.mxu0 0.0
        %1561 = vmatprep.subr.mxu0 0.0
        %1562 = vmatpush2.msra.mxu0 0.0
        %1563 = vmatprep.subr.mxu0 0.0
        %1564 = vmatpush2.msra.mxu0 0.0
        %1565 = vmatprep.subr.mxu0 0.0
        %1566 = vmatpush2.msra.mxu0 0.0
        %1567 = vmatprep.subr.mxu0 0.0
        %1568 = vmatpush2.msra.mxu0 0.0
        %1569 = vmatprep.subr.mxu0 0.0
        %1570 = vmatpush2.msra.mxu0 0.0
        %1571 = vmatprep.subr.mxu0 0.0
        %1572 = vmatpush2.msra.mxu0 0.0
        %1573 = vmatprep.subr.mxu0 0.0
        %1574 = vmatpush2.msra.mxu0 0.0
        %1575 = vmatprep.subr.mxu0 0.0
        %1576 = vmatpush2.msra.mxu0 0.0
        %1577 = vmatprep.subr.mxu0 0.0
        %1578 = vmatpush2.msra.mxu0 0.0
        %1579 = vmatprep.subr.mxu0 0.0
        %1580 = vmatpush2.msra.mxu0 0.0
        %1581 = vmatprep.subr.mxu0 0.0
        %1582 = vmatpush2.msra.mxu0 0.0
        %1583 = vmatprep.subr.mxu0 0.0
        %1584 = vmatpush2.msra.mxu0 0.0
        %1585 = vmatprep.mubr.f32.mxu0 0.0
        %1586 = vmatmul.mubr.f32.gmra.mxu0 %v1516
        %v1587 = vpop.f32.mrf.mxu0
        %v1588 = vadd.f32 0.0, %v1587
        %v1589 = vpop.f32.mrf.mxu0
        %1590 = vmatprep.mubr.f32.mxu0 0.0
        %1591 = vmatmul.mubr.f32.gmra.mxu0 %v1519
        %v1592 = vpop.f32.mrf.mxu0
        %v1593 = vadd.f32 0.0, %v1592
        %v1594 = vpop.f32.mrf.mxu0
        %1595 = vdwg.mxu0
        %v1596 = vadd.f32 %v1309, %v1588
        %v1597 = vadd.f32 %v1310, %v1593
        %1598 = vst [vmem:[%s244] sm:$0xff] %v1596
        %1599 = vst [vmem:[%s244 + $0x8] sm:$0xff] %v1597
        %s1600 = sand.u32 %s119, 1
        %s1601 = scalar_lea.sflag [#allocation4], %s1600
        %s1602 = sand.u32 %s119, 1
        %s1603 = smul.addr %s1602, 16
        %s1604 = scalar_lea.vmem [#allocation8], %s1603
        // Predicated region
        $region49: #{attention_forward.1} parent=35 // pred_check
          %p1605 = pneg %p129
        $region50: #{attention_forward.1} parent=35 // pred_check_branch
          %1607 = sbr.rel (%p1605) target = $region52
        $region51: #{attention_forward.1} parent=35 // pred_region
          %s1609 = ssub.s32 256, 256
          %1610 = vsyncadd %s1601, %s1609
          %s1611 = smul.addr %s22, 2
          %s1612 = smul.addr %s1611, 128
          %s1613 = scalar_lea.hbm %s4, %s1612
          %s1614 = sshll.u32 %s1604, 4
          %s1615 = int_to_ptr.vmem [resolvable:$true] %s1614
          %1620 = dma.vmem_to_hbm [thread:$0]  %s1615, 256, %s1613, %s1601, 128, 128, 8
        $region52: #{attention_forward.1} parent=35 // pred_fallthru
          _
      $region36: #{attention_forward.1} parent=5 // pred_fallthru
        _
      %p1621 = scmp.le.s32.totalorder 2, %s17
      // Predicated region
      $region53: #{attention_forward.1} parent=5 // pred_check
        %p1622 = pneg %p1621
      $region54: #{attention_forward.1} parent=5 // pred_check_branch
        %1624 = sbr.rel (%p1622) target = $region56
      $region55: #{attention_forward.1} parent=5 // pred_region
        %s1625 = ssub.s32 %s17, 2
        // Predicated region
        $region57: #{attention_forward.1} parent=55 // pred_check
          %p1626 = pneg %p135
        $region58: #{attention_forward.1} parent=55 // pred_check_branch
          %1628 = sbr.rel (%p1626) target = $region60
        $region59: #{attention_forward.1} parent=55 // pred_region
          %s1629 = sand.u32 %s120, 1
          %s1630 = scalar_lea.sflag [#allocation4], %s1629
          %s1631 = sand.u32 %s120, 1
          %s1632 = smul.addr %s1631, 16
          %s1633 = scalar_lea.vmem [#allocation8], %s1632
          %1634 = dma.done %s1630, 256
        $region60: #{attention_forward.1} parent=55 // pred_fallthru
          _
      $region56: #{attention_forward.1} parent=5 // pred_fallthru
        _
    $region6: #{attention_forward.1} parent=1 // loop_footer
      %s21 = sadd.s32 1, %s17
    $region7: #{attention_forward.1} parent=1 // loop_footer_branch
      %16 = sbr.rel target = $region3
    $region8: #{attention_forward.1} parent=1 // loop_exit
      _
    %1635 = vsyncpa [#allocation3], 1
    %s1636 = scalar_lea.sflag [#allocation3], 1
    %1637 = vsyncpa %s1636, 1
    %1638 = vsyncpa [#allocation6], 1
    %1639 = vsyncpa [#allocation4], 1
    %s1640 = scalar_lea.sflag [#allocation4], 1
    %1641 = vsyncpa %s1640, 1

</llo_original>
